<compile_context>
chip_gen: v6e
topology: v6e:2x2x1
jax: 0.10.0
libtpu: 0.0.40
codegen_flags: <defaults>
</compile_context>

<pallas_src>
import jax
import jax.numpy as jnp
from jax.experimental import pallas as pl
from jax.experimental.pallas import tpu as pltpu

# SELU constants (same as torch.nn.functional.selu)
_SELU_ALPHA = 1.6732632423543772
_SELU_SCALE = 1.0507009873554805


def _selu(x):
    # Clamp the exp argument so the (always-evaluated) negative branch never
    # overflows for large positive x; exp lands on the EUP (free slot vs VPU).
    xn = jnp.minimum(x, 0.0)
    # TODO(synk): switch to jnp.expm1 once Mosaic lowering support is confirmed
    # (slightly better precision for tiny |x|; semantics otherwise identical).
    em1 = jnp.exp(xn) - 1.0
    return _SELU_SCALE * jnp.where(x > 0, x, _SELU_ALPHA * em1)


def dw_encoder_kernel(x_ref,
                      w1_ref, b1_ref,
                      w2_ref, b2_ref,
                      w3_ref, b3_ref,
                      wh_ref, bh_ref,
                      out_ref):
    # Matmul-operand dtype (f32 by default, bf16 when use_bf16_matmuls=True).
    # Biases / activations / accumulation stay f32.
    cdt = w1_ref.dtype
    x = x_ref[...].astype(cdt)

    h = jnp.dot(x, w1_ref[...], preferred_element_type=jnp.float32) + b1_ref[...]
    h = _selu(h)
    h = jnp.dot(h.astype(cdt), w2_ref[...], preferred_element_type=jnp.float32) + b2_ref[...]
    h = _selu(h)
    h = jnp.dot(h.astype(cdt), w3_ref[...], preferred_element_type=jnp.float32) + b3_ref[...]
    h = jnp.tanh(h)

    # Fused (mu | logvar) head: one MXU push -> [tile, 2*zdim], then a cheap
    # XLU transpose so the store is lane-dense on the batch axis and the HBM
    # writeback is unpadded (no 128-lane zero-pad).
    head = jnp.dot(h.astype(cdt), wh_ref[...], preferred_element_type=jnp.float32) + bh_ref[...]
    out_ref[...] = head.T.astype(out_ref.dtype)          # [2*zdim, tile]


def _pick_batch_tile(B, cap=2048):
    """Pick the batch tile for the transposed (lane-dense) output layout.

    Constraints: the tile must divide B, and must be a multiple of 128 (so the
    batch axis is lane-dense in the transposed output block) or equal to B
    (full-array block, always legal).  Preferences: >= 2 grid steps with an
    EVEN step count (balanced work across v7x's two TensorCores), and as large
    as possible up to `cap` to amortize the ~0.35us per-grid-step pipeline
    overhead and the per-step MXU weight pushes.  VMEM is not a concern here:
    a 2048x128 f32 activation slab is 1 MiB.
    """
    if B <= 128:
        return B
    cands = [t for t in range(128, min(cap, B // 2) + 1, 128) if B % t == 0]
    if not cands:
        return B  # no 128-multiple divisor: single full-batch tile
    even = [t for t in cands if (B // t) % 2 == 0]
    pool = even if even else cands
    return max(pool)


def dw_encoder(x, params, *, batch_tile=None, use_bf16_matmuls=False):
    """params: dict with w1,b1,w2,b2,w3,b3,wmu,bmu,wlv,blv (weights [in,out], biases [1,out])."""
    B, xdim = x.shape
    hdim = params["w1"].shape[1]
    zdim = params["wmu"].shape[1]

    if batch_tile is None:
        batch_tile = _pick_batch_tile(B)
    assert B % batch_tile == 0, "batch must be a multiple of batch_tile"
    assert batch_tile == B or batch_tile % 128 == 0, \
        "batch_tile must be a multiple of 128 (lane-dense transposed store) or == B"

    wdt = jnp.bfloat16 if use_bf16_matmuls else jnp.float32
    w1 = params["w1"].astype(wdt)
    w2 = params["w2"].astype(wdt)
    w3 = params["w3"].astype(wdt)
    # Fused head weights [hdim, 2*zdim] / bias [1, 2*zdim] — NO lane padding;
    # the transposed output keeps the store lane-dense without it.
    head_w = jnp.concatenate([params["wmu"], params["wlv"]], axis=1).astype(wdt)
    head_b = jnp.concatenate([params["bmu"], params["blv"]], axis=1)  # f32

    grid = (B // batch_tile,)

    def full(a):
        # Whole-array block, same block for every grid step (grid-invariant).
        # NOTE: if hdim is scaled to production size (>= ~2048), single-buffer
        # these grid-invariant blocks (pipeline_mode=pl.Buffered(1)) and set
        # vmem_limit_bytes explicitly — double-buffering blocks whose index
        # never changes only doubles VMEM (matters on v7x's 64 MiB).  At this
        # size (< 100 KiB total) the default costs nothing.
        return pl.BlockSpec(a.shape, lambda i: (0,) * a.ndim)

    in_specs = [
        pl.BlockSpec((batch_tile, xdim), lambda i: (i, 0)),   # x tile
        full(w1), full(params["b1"]),
        full(w2), full(params["b2"]),
        full(w3), full(params["b3"]),
        full(head_w), full(head_b),
    ]
    # Transposed output: (2*zdim, B); batch on the lane axis -> lane-dense store.
    out_specs = pl.BlockSpec((2 * zdim, batch_tile), lambda i: (0, i))

    # Advisory cost hint with the true (unpadded) flops/bytes.
    wbytes = wdt.dtype.itemsize if hasattr(wdt, "dtype") else jnp.dtype(wdt).itemsize
    flops = 2 * B * (xdim * hdim + 2 * hdim * hdim + hdim * 2 * zdim)
    transcendentals = 3 * B * hdim                       # 2x SELU exp + 1x tanh
    bytes_accessed = (4 * B * xdim + 4 * B * 2 * zdim
                      + wbytes * (xdim * hdim + 2 * hdim * hdim + hdim * 2 * zdim)
                      + 4 * (3 * hdim + 2 * zdim))
    cost = pl.CostEstimate(flops=int(flops),
                           transcendentals=int(transcendentals),
                           bytes_accessed=int(bytes_accessed))

    out = pl.pallas_call(
        dw_encoder_kernel,
        out_shape=jax.ShapeDtypeStruct((2 * zdim, B), jnp.float32),
        grid_spec=pltpu.PrefetchScalarGridSpec(
            num_scalar_prefetch=0,
            grid=grid,
            in_specs=in_specs,
            out_specs=out_specs,
        ),
        compiler_params=pltpu.CompilerParams(
            dimension_semantics=("parallel",)),
        cost_estimate=cost,
    )(x, w1, params["b1"], w2, params["b2"], w3, params["b3"], head_w, head_b)

    mu = out[:zdim, :].T        # [B, zdim]
    logvar = out[zdim:, :].T    # [B, zdim]
    return mu, logvar


def init_params(key, xdim, hdim, zdim):
    """Deterministic PyTorch-Linear-style init; weights stored as [in, out]."""
    def linear(k, fan_in, fan_out):
        kw, kb = jax.random.split(k)
        bound = 1.0 / jnp.sqrt(fan_in)
        w = jax.random.uniform(kw, (fan_in, fan_out), jnp.float32, -bound, bound)
        b = jax.random.uniform(kb, (1, fan_out), jnp.float32, -bound, bound)
        return w, b

    k1, k2, k3, k4, k5 = jax.random.split(key, 5)
    w1, b1 = linear(k1, xdim, hdim)
    w2, b2 = linear(k2, hdim, hdim)
    w3, b3 = linear(k3, hdim, hdim)
    wmu, bmu = linear(k4, hdim, zdim)
    wlv, blv = linear(k5, hdim, zdim)
    return dict(w1=w1, b1=b1, w2=w2, b2=b2, w3=w3, b3=b3,
                wmu=wmu, bmu=bmu, wlv=wlv, blv=blv)


def reference(x, p):
    # Pure-JAX reference (same default matmul precision as the kernel's f32
    # path; pass precision=lax.Precision.HIGHEST in both if bit-faithful f32
    # parity with PyTorch is required).
    h = _selu(x @ p["w1"] + p["b1"])
    h = _selu(h @ p["w2"] + p["b2"])
    h = jnp.tanh(h @ p["w3"] + p["b3"])
    return h @ p["wmu"] + p["bmu"], h @ p["wlv"] + p["blv"]


if __name__ == "__main__":
    key = jax.random.PRNGKey(0)
    kx, kp = jax.random.split(key)

    # Module defaults: xdim=2, hdim=100, zdim=1.
    B, XDIM, HDIM, ZDIM = 512, 2, 100, 1
    x = jax.random.normal(kx, (B, XDIM), jnp.float32)
    params = init_params(kp, XDIM, HDIM, ZDIM)

    # f32 path: auto batch_tile -> 256, grid = (2,) (even -> balanced on v7x).
    mu, logvar = dw_encoder(x, params)
    jax.block_until_ready((mu, logvar))

    mu_ref, lv_ref = reference(x, params)
    assert mu.shape == (B, ZDIM) and logvar.shape == (B, ZDIM)
    assert jnp.allclose(mu, mu_ref, atol=1e-4, rtol=1e-4)
    assert jnp.allclose(logvar, lv_ref, atol=1e-4, rtol=1e-4)

    # Small-batch fallback path: batch_tile == B, single grid step.
    xs = x[:16]
    mu_s, lv_s = dw_encoder(xs, params)
    jax.block_until_ready((mu_s, lv_s))
    assert jnp.allclose(mu_s, mu_ref[:16], atol=1e-4, rtol=1e-4)
    assert jnp.allclose(lv_s, lv_ref[:16], atol=1e-4, rtol=1e-4)

    # bf16 matmul-operand path (native MXU dtype; f32 accumulation/activations).
    mu_b, lv_b = dw_encoder(x, params, use_bf16_matmuls=True)
    jax.block_until_ready((mu_b, lv_b))
    assert jnp.allclose(mu_b, mu_ref, atol=5e-2, rtol=5e-2)
    assert jnp.allclose(lv_b, lv_ref, atol=5e-2, rtol=5e-2)

    print("KERNEL_OK")
</pallas_src>

<mosaic_0001>
module attributes {stable_mosaic.version = 11 : i64} {
  func.func @dw_encoder_kernel(%arg0: i32, %arg1: memref<256x2xf32, #tpu.memory_space<vmem>>, %arg2: memref<2x100xf32, #tpu.memory_space<vmem>>, %arg3: memref<1x100xf32, #tpu.memory_space<vmem>>, %arg4: memref<100x100xf32, #tpu.memory_space<vmem>>, %arg5: memref<1x100xf32, #tpu.memory_space<vmem>>, %arg6: memref<100x100xf32, #tpu.memory_space<vmem>>, %arg7: memref<1x100xf32, #tpu.memory_space<vmem>>, %arg8: memref<100x2xf32, #tpu.memory_space<vmem>>, %arg9: memref<1x2xf32, #tpu.memory_space<vmem>>, %arg10: memref<2x256xf32, #tpu.memory_space<vmem>>) attributes {dimension_semantics = [#tpu.dimension_semantics<parallel>], iteration_bounds = array<i64: 2>, scalar_prefetch = 0 : i64, scratch_operands = 0 : i64, tpu.core_type = #tpu.core_type<tc>, window_params = [{transform_indices = @transform_0, window_bounds = array<i64: 256, 2>}, {pipeline_mode = #tpu.pipeline_mode<synchronous>, transform_indices = @transform_1, window_bounds = array<i64: 2, 100>}, {pipeline_mode = #tpu.pipeline_mode<synchronous>, transform_indices = @transform_2, window_bounds = array<i64: 1, 100>}, {pipeline_mode = #tpu.pipeline_mode<synchronous>, transform_indices = @transform_3, window_bounds = array<i64: 100, 100>}, {pipeline_mode = #tpu.pipeline_mode<synchronous>, transform_indices = @transform_4, window_bounds = array<i64: 1, 100>}, {pipeline_mode = #tpu.pipeline_mode<synchronous>, transform_indices = @transform_5, window_bounds = array<i64: 100, 100>}, {pipeline_mode = #tpu.pipeline_mode<synchronous>, transform_indices = @transform_6, window_bounds = array<i64: 1, 100>}, {pipeline_mode = #tpu.pipeline_mode<synchronous>, transform_indices = @transform_7, window_bounds = array<i64: 100, 2>}, {pipeline_mode = #tpu.pipeline_mode<synchronous>, transform_indices = @transform_8, window_bounds = array<i64: 1, 2>}, {transform_indices = @transform_9, window_bounds = array<i64: 2, 256>}]} {
    %c0 = arith.constant 0 : index
    %c0_0 = arith.constant 0 : index
    %0 = vector.load %arg1[%c0, %c0_0] : memref<256x2xf32, #tpu.memory_space<vmem>>, vector<256x2xf32>
    %c0_1 = arith.constant 0 : index
    %c0_2 = arith.constant 0 : index
    %1 = vector.load %arg2[%c0_1, %c0_2] : memref<2x100xf32, #tpu.memory_space<vmem>>, vector<2x100xf32>
    %cst = arith.constant dense<0.000000e+00> : vector<256x100xf32>
    %2 = tpu.matmul %0, %1, %cst {dimension_numbers = #tpu.dot_dimension_numbers<[1], [0], [0], [1], [0, 0, 1, 1], [], []>} : vector<256x2xf32>, vector<2x100xf32>, vector<256x100xf32> -> vector<256x100xf32>
    %c0_3 = arith.constant 0 : index
    %c0_4 = arith.constant 0 : index
    %3 = vector.load %arg3[%c0_3, %c0_4] : memref<1x100xf32, #tpu.memory_space<vmem>>, vector<1x100xf32>
    %4 = vector.broadcast %3 : vector<1x100xf32> to vector<256x100xf32>
    %5 = arith.addf %2, %4 : vector<256x100xf32>
    %cst_5 = arith.constant 0.000000e+00 : f32
    %6 = vector.broadcast %cst_5 : f32 to vector<256x100xf32>
    %7 = arith.minimumf %5, %6 : vector<256x100xf32>
    %8 = math.exp %7 : vector<256x100xf32>
    %cst_6 = arith.constant 1.000000e+00 : f32
    %9 = vector.broadcast %cst_6 : f32 to vector<256x100xf32>
    %10 = arith.subf %8, %9 : vector<256x100xf32>
    %cst_7 = arith.constant 0.000000e+00 : f32
    %11 = vector.broadcast %cst_7 : f32 to vector<256x100xf32>
    %12 = arith.cmpf ogt, %5, %11 : vector<256x100xf32>
    %cst_8 = arith.constant 1.67326319 : f32
    %13 = vector.broadcast %cst_8 : f32 to vector<256x100xf32>
    %14 = arith.mulf %13, %10 : vector<256x100xf32>
    %15 = arith.select %12, %5, %14 : vector<256x100xi1>, vector<256x100xf32>
    %cst_9 = arith.constant 1.05070102 : f32
    %16 = vector.broadcast %cst_9 : f32 to vector<256x100xf32>
    %17 = arith.mulf %16, %15 : vector<256x100xf32>
    %c0_10 = arith.constant 0 : index
    %c0_11 = arith.constant 0 : index
    %18 = vector.load %arg4[%c0_10, %c0_11] : memref<100x100xf32, #tpu.memory_space<vmem>>, vector<100x100xf32>
    %cst_12 = arith.constant dense<0.000000e+00> : vector<256x100xf32>
    %19 = tpu.matmul %17, %18, %cst_12 {dimension_numbers = #tpu.dot_dimension_numbers<[1], [0], [0], [1], [0, 0, 1, 1], [], []>} : vector<256x100xf32>, vector<100x100xf32>, vector<256x100xf32> -> vector<256x100xf32>
    %c0_13 = arith.constant 0 : index
    %c0_14 = arith.constant 0 : index
    %20 = vector.load %arg5[%c0_13, %c0_14] : memref<1x100xf32, #tpu.memory_space<vmem>>, vector<1x100xf32>
    %21 = vector.broadcast %20 : vector<1x100xf32> to vector<256x100xf32>
    %22 = arith.addf %19, %21 : vector<256x100xf32>
    %cst_15 = arith.constant 0.000000e+00 : f32
    %23 = vector.broadcast %cst_15 : f32 to vector<256x100xf32>
    %24 = arith.minimumf %22, %23 : vector<256x100xf32>
    %25 = math.exp %24 : vector<256x100xf32>
    %cst_16 = arith.constant 1.000000e+00 : f32
    %26 = vector.broadcast %cst_16 : f32 to vector<256x100xf32>
    %27 = arith.subf %25, %26 : vector<256x100xf32>
    %cst_17 = arith.constant 0.000000e+00 : f32
    %28 = vector.broadcast %cst_17 : f32 to vector<256x100xf32>
    %29 = arith.cmpf ogt, %22, %28 : vector<256x100xf32>
    %cst_18 = arith.constant 1.67326319 : f32
    %30 = vector.broadcast %cst_18 : f32 to vector<256x100xf32>
    %31 = arith.mulf %30, %27 : vector<256x100xf32>
    %32 = arith.select %29, %22, %31 : vector<256x100xi1>, vector<256x100xf32>
    %cst_19 = arith.constant 1.05070102 : f32
    %33 = vector.broadcast %cst_19 : f32 to vector<256x100xf32>
    %34 = arith.mulf %33, %32 : vector<256x100xf32>
    %c0_20 = arith.constant 0 : index
    %c0_21 = arith.constant 0 : index
    %35 = vector.load %arg6[%c0_20, %c0_21] : memref<100x100xf32, #tpu.memory_space<vmem>>, vector<100x100xf32>
    %cst_22 = arith.constant dense<0.000000e+00> : vector<256x100xf32>
    %36 = tpu.matmul %34, %35, %cst_22 {dimension_numbers = #tpu.dot_dimension_numbers<[1], [0], [0], [1], [0, 0, 1, 1], [], []>} : vector<256x100xf32>, vector<100x100xf32>, vector<256x100xf32> -> vector<256x100xf32>
    %c0_23 = arith.constant 0 : index
    %c0_24 = arith.constant 0 : index
    %37 = vector.load %arg7[%c0_23, %c0_24] : memref<1x100xf32, #tpu.memory_space<vmem>>, vector<1x100xf32>
    %38 = vector.broadcast %37 : vector<1x100xf32> to vector<256x100xf32>
    %39 = arith.addf %36, %38 : vector<256x100xf32>
    %40 = math.tanh %39 : vector<256x100xf32>
    %c0_25 = arith.constant 0 : index
    %c0_26 = arith.constant 0 : index
    %41 = vector.load %arg8[%c0_25, %c0_26] : memref<100x2xf32, #tpu.memory_space<vmem>>, vector<100x2xf32>
    %cst_27 = arith.constant dense<0.000000e+00> : vector<256x2xf32>
    %42 = tpu.matmul %40, %41, %cst_27 {dimension_numbers = #tpu.dot_dimension_numbers<[1], [0], [0], [1], [0, 0, 1, 1], [], []>} : vector<256x100xf32>, vector<100x2xf32>, vector<256x2xf32> -> vector<256x2xf32>
    %c0_28 = arith.constant 0 : index
    %c0_29 = arith.constant 0 : index
    %43 = vector.load %arg9[%c0_28, %c0_29] : memref<1x2xf32, #tpu.memory_space<vmem>>, vector<1x2xf32>
    %44 = vector.broadcast %43 : vector<1x2xf32> to vector<256x2xf32>
    %45 = arith.addf %42, %44 : vector<256x2xf32>
    %46 = tpu.transpose %45, [1, 0] : vector<256x2xf32> -> vector<2x256xf32>
    %c0_30 = arith.constant 0 : index
    %c0_31 = arith.constant 0 : index
    %47 = vector.load %arg10[%c0_30, %c0_31] : memref<2x256xf32, #tpu.memory_space<vmem>>, vector<2x256xf32>
    tpu.vector_store %arg10[%c0_30, %c0_31], %46 {strides = array<i32>} : memref<2x256xf32, #tpu.memory_space<vmem>>, vector<2x256xf32>,
    return
  }
  func.func @transform_0(%arg0: i32) -> (i32, i32) {
    %c0_i32 = arith.constant 0 : i32
    %c0_i32_0 = arith.constant 0 : i32
    return %arg0, %c0_i32 : i32, i32
  }
  func.func @transform_1(%arg0: i32) -> (i32, i32) {
    %c0_i32 = arith.constant 0 : i32
    %c0_i32_0 = arith.constant 0 : i32
    %c0_i32_1 = arith.constant 0 : i32
    return %c0_i32, %c0_i32_0 : i32, i32
  }
  func.func @transform_2(%arg0: i32) -> (i32, i32) {
    %c0_i32 = arith.constant 0 : i32
    %c0_i32_0 = arith.constant 0 : i32
    %c0_i32_1 = arith.constant 0 : i32
    return %c0_i32, %c0_i32_0 : i32, i32
  }
  func.func @transform_3(%arg0: i32) -> (i32, i32) {
    %c0_i32 = arith.constant 0 : i32
    %c0_i32_0 = arith.constant 0 : i32
    %c0_i32_1 = arith.constant 0 : i32
    return %c0_i32, %c0_i32_0 : i32, i32
  }
  func.func @transform_4(%arg0: i32) -> (i32, i32) {
    %c0_i32 = arith.constant 0 : i32
    %c0_i32_0 = arith.constant 0 : i32
    %c0_i32_1 = arith.constant 0 : i32
    return %c0_i32, %c0_i32_0 : i32, i32
  }
  func.func @transform_5(%arg0: i32) -> (i32, i32) {
    %c0_i32 = arith.constant 0 : i32
    %c0_i32_0 = arith.constant 0 : i32
    %c0_i32_1 = arith.constant 0 : i32
    return %c0_i32, %c0_i32_0 : i32, i32
  }
  func.func @transform_6(%arg0: i32) -> (i32, i32) {
    %c0_i32 = arith.constant 0 : i32
    %c0_i32_0 = arith.constant 0 : i32
    %c0_i32_1 = arith.constant 0 : i32
    return %c0_i32, %c0_i32_0 : i32, i32
  }
  func.func @transform_7(%arg0: i32) -> (i32, i32) {
    %c0_i32 = arith.constant 0 : i32
    %c0_i32_0 = arith.constant 0 : i32
    %c0_i32_1 = arith.constant 0 : i32
    return %c0_i32, %c0_i32_0 : i32, i32
  }
  func.func @transform_8(%arg0: i32) -> (i32, i32) {
    %c0_i32 = arith.constant 0 : i32
    %c0_i32_0 = arith.constant 0 : i32
    %c0_i32_1 = arith.constant 0 : i32
    return %c0_i32, %c0_i32_0 : i32, i32
  }
  func.func @transform_9(%arg0: i32) -> (i32, i32) {
    %c0_i32 = arith.constant 0 : i32
    %c0_i32_0 = arith.constant 0 : i32
    return %c0_i32, %arg0 : i32, i32
  }
}

</mosaic_0001>

<llo_original>
// kernel: tpu_custom_call.1
$region0: #{tpu_custom_call.1}
  #allocation0 [shape = 'u32[]', space=smem, size = 0x4, offset = 0x4, fixed_abs, tag = 'smem constant byte address 0x4 - core index']
  #allocation1 [shape = 'u32[144,128]{1,0:T(1,128)}', space=vmem, size = 0x12000, scoped, tag = 'internal scratch']
  %s0 = inlined_call_operand.vmem [shape: f32[512,2], index: 0, kind: input, shape index: {}]
  %s1 = inlined_call_operand.vmem [shape: f32[2,100], index: 1, kind: input, shape index: {}]
  %s2 = inlined_call_operand.vmem [shape: f32[1,100], index: 2, kind: input, shape index: {}]
  %s3 = inlined_call_operand.vmem [shape: f32[100,100], index: 3, kind: input, shape index: {}]
  %s4 = inlined_call_operand.vmem [shape: f32[1,100], index: 4, kind: input, shape index: {}]
  %s5 = inlined_call_operand.vmem [shape: f32[100,100], index: 5, kind: input, shape index: {}]
  %s6 = inlined_call_operand.vmem [shape: f32[1,100], index: 6, kind: input, shape index: {}]
  %s7 = inlined_call_operand.vmem [shape: f32[100,2], index: 7, kind: input, shape index: {}]
  %s8 = inlined_call_operand.vmem [shape: f32[1,2], index: 8, kind: input, shape index: {}]
  %s9 = inlined_call_operand.hbm [shape: f32[2,512], index: 9, kind: output, shape index: {}]
  %s10 = sld [smem:[#allocation0]]
  $region69: #{tpu_custom_call.1} parent=0
    _
  %s12 = ssub.s32 1, %s10
  %s13 = scalar_select 0, %s12, %s10
  $region1: #{tpu_custom_call.1} parent=0
    #allocation2 [shape = 'u8[4096]{0}', space=vmem, size = 0x1000, scoped, tag = 'output window, operand 0']
    #allocation3 [shape = 's32[2]{0}', space=sflag, size = 0x8, scoped, tag = 'scoped memory for tpu_custom_call.1']
    %14 = vsyncpa [#allocation3], 0
    %s15 = scalar_lea.sflag [#allocation3], 1
    %16 = vsyncpa %s15, 0
    loop: start=0, step=1, limit=4
    $region2: #{tpu_custom_call.1} parent=1 // loop_pre_header
      _
    $region3: #{tpu_custom_call.1} parent=1 // loop_header
      %s18 = sphi 0, %s22
      %p19 = scmp.ge.s32.totalorder %s18, 4
      %s28 = sphi 0, %s30
      %s31 = sphi 0, %s28
      %s32 = sphi 0, %s31
      %s48 = sphi 0, %s32
      %s52 = sphi 0, %s52
      %s54 = sphi 0, %s52
      %s55 = sphi 0, %s54
      %s69 = sphi 0, %s55
      %s73 = sphi 0, %s73
      %s75 = sphi 0, %s73
      %s76 = sphi 0, %s75
      %s90 = sphi 0, %s76
      %s94 = sphi 0, %s94
      %s96 = sphi 0, %s94
      %s97 = sphi 0, %s96
      %s111 = sphi 0, %s97
      %s115 = sphi 0, %s115
      %s117 = sphi 0, %s115
      %s118 = sphi 0, %s117
      %s132 = sphi 0, %s118
      %s136 = sphi 0, %s136
      %s138 = sphi 0, %s136
      %s139 = sphi 0, %s138
      %s153 = sphi 0, %s139
      %s157 = sphi 0, %s157
      %s159 = sphi 0, %s157
      %s160 = sphi 0, %s159
      %s174 = sphi 0, %s160
      %s178 = sphi 0, %s178
      %s180 = sphi 0, %s178
      %s181 = sphi 0, %s180
      %s195 = sphi 0, %s181
      %s199 = sphi 0, %s199
      %s201 = sphi 0, %s199
      %s202 = sphi 0, %s201
      %s216 = sphi 0, %s202
      %s222 = sphi 0, %s224
      %s225 = sphi 0, %s222
      %s226 = sphi 0, %s225
      %s242 = sphi 0, %s226
    $region4: #{tpu_custom_call.1} parent=1 // loop_header_branch
      %21 = sbr.rel (%p19) target = $region8
    $region5: #{tpu_custom_call.1} parent=1 // loop_body
      %s23 = ssub.s32 %s18, 1
      %s24 = ssub.s32 %s18, 2
      %s25 = sadd.s32 %s18, 1
      %s26 = ssub.s32 %s18, %s25
      %p27 = scmp.eq.s32.totalorder %s26, 0
      %s29 = sadd.s32 %s28, 1
      %s30 = scalar_select %p27, %s28, %s29
      %p33 = pneg %p27
      %p34 = scmp.eq.s32.totalorder %s18, 1
      %p35 = por %p33, %p34
      %p36 = scmp.ne.s32.totalorder %s28, %s31
      %p37 = scmp.eq.s32.totalorder %s18, 0
      %p38 = por %p36, %p37
      %p39 = scmp.ne.s32.totalorder %s28, %s31
      %p40 = scmp.eq.s32.totalorder %s23, 1
      %p41 = por %p39, %p40
      %p42 = scmp.ne.s32.totalorder %s31, %s32
      %p43 = scmp.eq.s32.totalorder %s23, 0
      %p44 = por %p42, %p43
      %p45 = scmp.ne.s32.totalorder %s31, %s32
      %p46 = scmp.eq.s32.totalorder %s24, 1
      %p47 = por %p45, %p46
      %p49 = scmp.ne.s32.totalorder %s32, %s48
      %p50 = scmp.eq.s32.totalorder %s24, 0
      %p51 = por %p49, %p50
      %s53 = sadd.s32 %s52, 1
      %p56 = scmp.eq.s32.totalorder %s18, 1
      %p57 = scmp.ne.s32.totalorder %s52, %s54
      %p58 = scmp.eq.s32.totalorder %s18, 0
      %p59 = por %p57, %p58
      %p60 = scmp.ne.s32.totalorder %s52, %s54
      %p61 = scmp.eq.s32.totalorder %s23, 1
      %p62 = por %p60, %p61
      %p63 = scmp.ne.s32.totalorder %s54, %s55
      %p64 = scmp.eq.s32.totalorder %s23, 0
      %p65 = por %p63, %p64
      %p66 = scmp.ne.s32.totalorder %s54, %s55
      %p67 = scmp.eq.s32.totalorder %s24, 1
      %p68 = por %p66, %p67
      %p70 = scmp.ne.s32.totalorder %s55, %s69
      %p71 = scmp.eq.s32.totalorder %s24, 0
      %p72 = por %p70, %p71
      %s74 = sadd.s32 %s73, 1
      %p77 = scmp.eq.s32.totalorder %s18, 1
      %p78 = scmp.ne.s32.totalorder %s73, %s75
      %p79 = scmp.eq.s32.totalorder %s18, 0
      %p80 = por %p78, %p79
      %p81 = scmp.ne.s32.totalorder %s73, %s75
      %p82 = scmp.eq.s32.totalorder %s23, 1
      %p83 = por %p81, %p82
      %p84 = scmp.ne.s32.totalorder %s75, %s76
      %p85 = scmp.eq.s32.totalorder %s23, 0
      %p86 = por %p84, %p85
      %p87 = scmp.ne.s32.totalorder %s75, %s76
      %p88 = scmp.eq.s32.totalorder %s24, 1
      %p89 = por %p87, %p88
      %p91 = scmp.ne.s32.totalorder %s76, %s90
      %p92 = scmp.eq.s32.totalorder %s24, 0
      %p93 = por %p91, %p92
      %s95 = sadd.s32 %s94, 1
      %p98 = scmp.eq.s32.totalorder %s18, 1
      %p99 = scmp.ne.s32.totalorder %s94, %s96
      %p100 = scmp.eq.s32.totalorder %s18, 0
      %p101 = por %p99, %p100
      %p102 = scmp.ne.s32.totalorder %s94, %s96
      %p103 = scmp.eq.s32.totalorder %s23, 1
      %p104 = por %p102, %p103
      %p105 = scmp.ne.s32.totalorder %s96, %s97
      %p106 = scmp.eq.s32.totalorder %s23, 0
      %p107 = por %p105, %p106
      %p108 = scmp.ne.s32.totalorder %s96, %s97
      %p109 = scmp.eq.s32.totalorder %s24, 1
      %p110 = por %p108, %p109
      %p112 = scmp.ne.s32.totalorder %s97, %s111
      %p113 = scmp.eq.s32.totalorder %s24, 0
      %p114 = por %p112, %p113
      %s116 = sadd.s32 %s115, 1
      %p119 = scmp.eq.s32.totalorder %s18, 1
      %p120 = scmp.ne.s32.totalorder %s115, %s117
      %p121 = scmp.eq.s32.totalorder %s18, 0
      %p122 = por %p120, %p121
      %p123 = scmp.ne.s32.totalorder %s115, %s117
      %p124 = scmp.eq.s32.totalorder %s23, 1
      %p125 = por %p123, %p124
      %p126 = scmp.ne.s32.totalorder %s117, %s118
      %p127 = scmp.eq.s32.totalorder %s23, 0
      %p128 = por %p126, %p127
      %p129 = scmp.ne.s32.totalorder %s117, %s118
      %p130 = scmp.eq.s32.totalorder %s24, 1
      %p131 = por %p129, %p130
      %p133 = scmp.ne.s32.totalorder %s118, %s132
      %p134 = scmp.eq.s32.totalorder %s24, 0
      %p135 = por %p133, %p134
      %s137 = sadd.s32 %s136, 1
      %p140 = scmp.eq.s32.totalorder %s18, 1
      %p141 = scmp.ne.s32.totalorder %s136, %s138
      %p142 = scmp.eq.s32.totalorder %s18, 0
      %p143 = por %p141, %p142
      %p144 = scmp.ne.s32.totalorder %s136, %s138
      %p145 = scmp.eq.s32.totalorder %s23, 1
      %p146 = por %p144, %p145
      %p147 = scmp.ne.s32.totalorder %s138, %s139
      %p148 = scmp.eq.s32.totalorder %s23, 0
      %p149 = por %p147, %p148
      %p150 = scmp.ne.s32.totalorder %s138, %s139
      %p151 = scmp.eq.s32.totalorder %s24, 1
      %p152 = por %p150, %p151
      %p154 = scmp.ne.s32.totalorder %s139, %s153
      %p155 = scmp.eq.s32.totalorder %s24, 0
      %p156 = por %p154, %p155
      %s158 = sadd.s32 %s157, 1
      %p161 = scmp.eq.s32.totalorder %s18, 1
      %p162 = scmp.ne.s32.totalorder %s157, %s159
      %p163 = scmp.eq.s32.totalorder %s18, 0
      %p164 = por %p162, %p163
      %p165 = scmp.ne.s32.totalorder %s157, %s159
      %p166 = scmp.eq.s32.totalorder %s23, 1
      %p167 = por %p165, %p166
      %p168 = scmp.ne.s32.totalorder %s159, %s160
      %p169 = scmp.eq.s32.totalorder %s23, 0
      %p170 = por %p168, %p169
      %p171 = scmp.ne.s32.totalorder %s159, %s160
      %p172 = scmp.eq.s32.totalorder %s24, 1
      %p173 = por %p171, %p172
      %p175 = scmp.ne.s32.totalorder %s160, %s174
      %p176 = scmp.eq.s32.totalorder %s24, 0
      %p177 = por %p175, %p176
      %s179 = sadd.s32 %s178, 1
      %p182 = scmp.eq.s32.totalorder %s18, 1
      %p183 = scmp.ne.s32.totalorder %s178, %s180
      %p184 = scmp.eq.s32.totalorder %s18, 0
      %p185 = por %p183, %p184
      %p186 = scmp.ne.s32.totalorder %s178, %s180
      %p187 = scmp.eq.s32.totalorder %s23, 1
      %p188 = por %p186, %p187
      %p189 = scmp.ne.s32.totalorder %s180, %s181
      %p190 = scmp.eq.s32.totalorder %s23, 0
      %p191 = por %p189, %p190
      %p192 = scmp.ne.s32.totalorder %s180, %s181
      %p193 = scmp.eq.s32.totalorder %s24, 1
      %p194 = por %p192, %p193
      %p196 = scmp.ne.s32.totalorder %s181, %s195
      %p197 = scmp.eq.s32.totalorder %s24, 0
      %p198 = por %p196, %p197
      %s200 = sadd.s32 %s199, 1
      %p203 = scmp.eq.s32.totalorder %s18, 1
      %p204 = scmp.ne.s32.totalorder %s199, %s201
      %p205 = scmp.eq.s32.totalorder %s18, 0
      %p206 = por %p204, %p205
      %p207 = scmp.ne.s32.totalorder %s199, %s201
      %p208 = scmp.eq.s32.totalorder %s23, 1
      %p209 = por %p207, %p208
      %p210 = scmp.ne.s32.totalorder %s201, %s202
      %p211 = scmp.eq.s32.totalorder %s23, 0
      %p212 = por %p210, %p211
      %p213 = scmp.ne.s32.totalorder %s201, %s202
      %p214 = scmp.eq.s32.totalorder %s24, 1
      %p215 = por %p213, %p214
      %p217 = scmp.ne.s32.totalorder %s202, %s216
      %p218 = scmp.eq.s32.totalorder %s24, 0
      %p219 = por %p217, %p218
      %s220 = ssub.s32 %s18, %s25
      %p221 = scmp.eq.s32.totalorder %s220, 0
      %s223 = sadd.s32 %s222, 1
      %s224 = scalar_select %p221, %s222, %s223
      %p227 = pneg %p221
      %p228 = scmp.eq.s32.totalorder %s18, 1
      %p229 = por %p227, %p228
      %p230 = scmp.ne.s32.totalorder %s222, %s225
      %p231 = scmp.eq.s32.totalorder %s18, 0
      %p232 = por %p230, %p231
      %p233 = scmp.ne.s32.totalorder %s222, %s225
      %p234 = scmp.eq.s32.totalorder %s23, 1
      %p235 = por %p233, %p234
      %p236 = scmp.ne.s32.totalorder %s225, %s226
      %p237 = scmp.eq.s32.totalorder %s23, 0
      %p238 = por %p236, %p237
      %p239 = scmp.ne.s32.totalorder %s225, %s226
      %p240 = scmp.eq.s32.totalorder %s24, 1
      %p241 = por %p239, %p240
      %p243 = scmp.ne.s32.totalorder %s226, %s242
      %p244 = scmp.eq.s32.totalorder %s24, 0
      %p245 = por %p243, %p244
      %p246 = scmp.le.s32.totalorder 1, %s18
      %p247 = scmp.lt.s32.totalorder %s18, 3
      %p248 = pnand %p246, %p247
      %p249 = pneg %p248
      // Predicated region
      $region9: #{tpu_custom_call.1} parent=5 // pred_check
        _
      $region10: #{tpu_custom_call.1} parent=5 // pred_check_branch
        %251 = sbr.rel (%p248) target = $region12
      $region11: #{tpu_custom_call.1} parent=5 // pred_region
        %s252 = ssub.s32 %s18, 1
        // Predicated region
        $region13: #{tpu_custom_call.1} parent=11 // pred_check
          %p253 = pneg %p65
        $region14: #{tpu_custom_call.1} parent=11 // pred_check_branch
          %255 = sbr.rel (%p253) target = $region16
        $region15: #{tpu_custom_call.1} parent=11 // pred_region
          _
        $region16: #{tpu_custom_call.1} parent=11 // pred_fallthru
          _
        // Predicated region
        $region17: #{tpu_custom_call.1} parent=11 // pred_check
          %p256 = pneg %p86
        $region18: #{tpu_custom_call.1} parent=11 // pred_check_branch
          %258 = sbr.rel (%p256) target = $region20
        $region19: #{tpu_custom_call.1} parent=11 // pred_region
          _
        $region20: #{tpu_custom_call.1} parent=11 // pred_fallthru
          _
        // Predicated region
        $region21: #{tpu_custom_call.1} parent=11 // pred_check
          %p259 = pneg %p107
        $region22: #{tpu_custom_call.1} parent=11 // pred_check_branch
          %261 = sbr.rel (%p259) target = $region24
        $region23: #{tpu_custom_call.1} parent=11 // pred_region
          _
        $region24: #{tpu_custom_call.1} parent=11 // pred_fallthru
          _
        // Predicated region
        $region25: #{tpu_custom_call.1} parent=11 // pred_check
          %p262 = pneg %p128
        $region26: #{tpu_custom_call.1} parent=11 // pred_check_branch
          %264 = sbr.rel (%p262) target = $region28
        $region27: #{tpu_custom_call.1} parent=11 // pred_region
          _
        $region28: #{tpu_custom_call.1} parent=11 // pred_fallthru
          _
        // Predicated region
        $region29: #{tpu_custom_call.1} parent=11 // pred_check
          %p265 = pneg %p149
        $region30: #{tpu_custom_call.1} parent=11 // pred_check_branch
          %267 = sbr.rel (%p265) target = $region32
        $region31: #{tpu_custom_call.1} parent=11 // pred_region
          _
        $region32: #{tpu_custom_call.1} parent=11 // pred_fallthru
          _
        // Predicated region
        $region33: #{tpu_custom_call.1} parent=11 // pred_check
          %p268 = pneg %p170
        $region34: #{tpu_custom_call.1} parent=11 // pred_check_branch
          %270 = sbr.rel (%p268) target = $region36
        $region35: #{tpu_custom_call.1} parent=11 // pred_region
          _
        $region36: #{tpu_custom_call.1} parent=11 // pred_fallthru
          _
        // Predicated region
        $region37: #{tpu_custom_call.1} parent=11 // pred_check
          %p271 = pneg %p191
        $region38: #{tpu_custom_call.1} parent=11 // pred_check_branch
          %273 = sbr.rel (%p271) target = $region40
        $region39: #{tpu_custom_call.1} parent=11 // pred_region
          _
        $region40: #{tpu_custom_call.1} parent=11 // pred_fallthru
          _
        // Predicated region
        $region41: #{tpu_custom_call.1} parent=11 // pred_check
          %p274 = pneg %p212
        $region42: #{tpu_custom_call.1} parent=11 // pred_check_branch
          %276 = sbr.rel (%p274) target = $region44
        $region43: #{tpu_custom_call.1} parent=11 // pred_region
          _
        $region44: #{tpu_custom_call.1} parent=11 // pred_fallthru
          _
      $region12: #{tpu_custom_call.1} parent=5 // pred_fallthru
        _
      %p277 = scmp.lt.s32.totalorder %s18, 2
      // Predicated region
      $region45: #{tpu_custom_call.1} parent=5 // pred_check
        %p278 = pneg %p277
      $region46: #{tpu_custom_call.1} parent=5 // pred_check_branch
        %280 = sbr.rel (%p278) target = $region48
      $region47: #{tpu_custom_call.1} parent=5 // pred_region
        // Predicated region
        $region49: #{tpu_custom_call.1} parent=47 // pred_check
          %p281 = pneg %p38
        $region50: #{tpu_custom_call.1} parent=47 // pred_check_branch
          %283 = sbr.rel (%p281) target = $region52
        $region51: #{tpu_custom_call.1} parent=47 // pred_region
          %s284 = smul.u32 32, %s18
          %p285 = scmp.lt.s32.totalorder %s284, 63
          %s286 = scalar_select %p285, %s284, 63
          %s287 = smul.addr %s286, 8
          %s288 = scalar_lea.vmem %s0, %s287
          %s289 = smul.u32 32, %s18
        $region52: #{tpu_custom_call.1} parent=47 // pred_fallthru
          _
      $region48: #{tpu_custom_call.1} parent=5 // pred_fallthru
        _
      %p290 = scmp.le.s32.totalorder 1, %s18
      %p291 = scmp.lt.s32.totalorder %s18, 3
      %p292 = pnand %p290, %p291
      %p293 = pneg %p292
      // Predicated region
      $region53: #{tpu_custom_call.1} parent=5 // pred_check
        _
      $region54: #{tpu_custom_call.1} parent=5 // pred_check_branch
        %295 = sbr.rel (%p292) target = $region56
      $region55: #{tpu_custom_call.1} parent=5 // pred_region
        %s296 = ssub.s32 %s18, 1
        %s297 = smul.u32 32, %s23
        %p298 = scmp.lt.s32.totalorder %s297, 63
        %s299 = scalar_select %p298, %s297, 63
        %s300 = smul.addr %s299, 8
        %s301 = scalar_lea.vmem %s0, %s300
        %p302 = pneg %p44
        %p303 = pneg %p41
        %p304 = pneg %p65
        %p305 = pneg %p62
        %p306 = pneg %p86
        %p307 = pneg %p83
        %p308 = pneg %p107
        %p309 = pneg %p104
        %p310 = pneg %p128
        %p311 = pneg %p125
        %p312 = pneg %p149
        %p313 = pneg %p146
        %p314 = pneg %p170
        %p315 = pneg %p167
        %p316 = pneg %p191
        %p317 = pneg %p188
        %p318 = pneg %p212
        %p319 = pneg %p209
        %p320 = pneg %p238
        %p321 = pneg %p235
        %s322 = sand.u32 %s225, 1
        %s323 = scalar_lea.sflag [#allocation3], %s322
        %s324 = sand.u32 %s225, 1
        %s325 = smul.addr %s324, 4
        %s326 = scalar_lea.vmem [#allocation2], %s325
        %s327 = smul.u32 32, %s23
        %p328 = scmp.lt.s32.totalorder %s327, 63
        %s329 = scalar_select %p328, %s327, 63
        %s330 = smul.addr %s329, 8
        %s331 = scalar_lea.vmem %s0, %s330
        %s332 = smul.u32 32, %s23
        %s333 = smul.u32 2, %s23
        %v334 = vld [vmem:[%s331] sm:$0xff]
        %v335 = vld [vmem:[%s331 + $0x8] sm:$0xff]
        %v336 = vld [vmem:[%s331 + $0x10] sm:$0xff]
        %v337 = vld [vmem:[%s331 + $0x18] sm:$0xff]
        %v338 = vld [vmem:[%s331 + $0x20] sm:$0xff]
        %v339 = vld [vmem:[%s331 + $0x28] sm:$0xff]
        %v340 = vld [vmem:[%s331 + $0x30] sm:$0xff]
        %v341 = vld [vmem:[%s331 + $0x38] sm:$0xff]
        %v342 = vld [vmem:[%s331 + $0x40] sm:$0xff]
        %v343 = vld [vmem:[%s331 + $0x48] sm:$0xff]
        %v344 = vld [vmem:[%s331 + $0x50] sm:$0xff]
        %v345 = vld [vmem:[%s331 + $0x58] sm:$0xff]
        %v346 = vld [vmem:[%s331 + $0x60] sm:$0xff]
        %v347 = vld [vmem:[%s331 + $0x68] sm:$0xff]
        %v348 = vld [vmem:[%s331 + $0x70] sm:$0xff]
        %v349 = vld [vmem:[%s331 + $0x78] sm:$0xff]
        %v350 = vld [vmem:[%s331 + $0x80] sm:$0xff]
        %v351 = vld [vmem:[%s331 + $0x88] sm:$0xff]
        %v352 = vld [vmem:[%s331 + $0x90] sm:$0xff]
        %v353 = vld [vmem:[%s331 + $0x98] sm:$0xff]
        %v354 = vld [vmem:[%s331 + $0xa0] sm:$0xff]
        %v355 = vld [vmem:[%s331 + $0xa8] sm:$0xff]
        %v356 = vld [vmem:[%s331 + $0xb0] sm:$0xff]
        %v357 = vld [vmem:[%s331 + $0xb8] sm:$0xff]
        %v358 = vld [vmem:[%s331 + $0xc0] sm:$0xff]
        %v359 = vld [vmem:[%s331 + $0xc8] sm:$0xff]
        %v360 = vld [vmem:[%s331 + $0xd0] sm:$0xff]
        %v361 = vld [vmem:[%s331 + $0xd8] sm:$0xff]
        %v362 = vld [vmem:[%s331 + $0xe0] sm:$0xff]
        %v363 = vld [vmem:[%s331 + $0xe8] sm:$0xff]
        %v364 = vld [vmem:[%s331 + $0xf0] sm:$0xff]
        %v365 = vld [vmem:[%s331 + $0xf8] sm:$0xff]
        %v366 = vld [vmem:[%s1] sm:$0x3]
        %v367 = vld [vmem:[%s2] sm:$0x1]
        %v369 = vlaneseq
        %v370 = vshrl.u32 %v369, 7
        %v371 = vsub.s32 0, %v370
        %v372 = vrot.slane %v367, %v371
        %vm374 = vcmask 15360
        %v376 = vsel %vm374, %v334, 0
        %v379 = vsel %vm374, %v335, 0
        %v382 = vsel %vm374, %v336, 0
        %v385 = vsel %vm374, %v337, 0
        %v388 = vsel %vm374, %v338, 0
        %v391 = vsel %vm374, %v339, 0
        %v394 = vsel %vm374, %v340, 0
        %v397 = vsel %vm374, %v341, 0
        %v400 = vsel %vm374, %v342, 0
        %v403 = vsel %vm374, %v343, 0
        %v406 = vsel %vm374, %v344, 0
        %v409 = vsel %vm374, %v345, 0
        %v412 = vsel %vm374, %v346, 0
        %v415 = vsel %vm374, %v347, 0
        %v418 = vsel %vm374, %v348, 0
        %v421 = vsel %vm374, %v349, 0
        %v424 = vsel %vm374, %v350, 0
        %v427 = vsel %vm374, %v351, 0
        %v430 = vsel %vm374, %v352, 0
        %v433 = vsel %vm374, %v353, 0
        %v436 = vsel %vm374, %v354, 0
        %v439 = vsel %vm374, %v355, 0
        %v442 = vsel %vm374, %v356, 0
        %v445 = vsel %vm374, %v357, 0
        %v448 = vsel %vm374, %v358, 0
        %v451 = vsel %vm374, %v359, 0
        %v454 = vsel %vm374, %v360, 0
        %v457 = vsel %vm374, %v361, 0
        %v460 = vsel %vm374, %v362, 0
        %v463 = vsel %vm374, %v363, 0
        %v466 = vsel %vm374, %v364, 0
        %v469 = vsel %vm374, %v365, 0
        %vm471 = vcmask 1041408
        %v473 = vsel %vm471, %v366, 0
        %475 = vmatprep.subr.mxu0 0.0
        %476 = vmatpush1.msra.mxu0 0.0
        %477 = vmatprep.subr.mxu0 0.0
        %478 = vmatpush1.msra.mxu0 0.0
        %479 = vmatprep.subr.mxu0 0.0
        %480 = vmatpush1.msra.mxu0 0.0
        %481 = vmatprep.subr.mxu0 0.0
        %482 = vmatpush1.msra.mxu0 0.0
        %483 = vmatprep.subr.mxu0 0.0
        %484 = vmatpush1.msra.mxu0 0.0
        %485 = vmatprep.subr.mxu0 0.0
        %486 = vmatpush1.msra.mxu0 0.0
        %487 = vmatprep.subr.mxu0 0.0
        %488 = vmatpush1.msra.mxu0 0.0
        %489 = vmatprep.subr.mxu0 0.0
        %490 = vmatpush1.msra.mxu0 0.0
        %491 = vmatprep.subr.mxu0 0.0
        %492 = vmatpush1.msra.mxu0 0.0
        %493 = vmatprep.subr.mxu0 0.0
        %494 = vmatpush1.msra.mxu0 0.0
        %495 = vmatprep.subr.mxu0 0.0
        %496 = vmatpush1.msra.mxu0 0.0
        %497 = vmatprep.subr.mxu0 0.0
        %498 = vmatpush1.msra.mxu0 0.0
        %499 = vmatprep.subr.mxu0 0.0
        %500 = vmatpush1.msra.mxu0 0.0
        %501 = vmatprep.subr.mxu0 0.0
        %502 = vmatpush1.msra.mxu0 0.0
        %503 = vmatprep.subr.mxu0 0.0
        %504 = vmatpush1.msra.mxu0 0.0
        %505 = vmatprep.subr.mxu0 0.0
        %506 = vmatpush1.msra.mxu0 %v473
        %507 = vmatprep.subr.mxu0 0.0
        %508 = vmatpush2.msra.mxu0 0.0
        %509 = vmatprep.subr.mxu0 0.0
        %510 = vmatpush2.msra.mxu0 0.0
        %511 = vmatprep.subr.mxu0 0.0
        %512 = vmatpush2.msra.mxu0 0.0
        %513 = vmatprep.subr.mxu0 0.0
        %514 = vmatpush2.msra.mxu0 0.0
        %515 = vmatprep.subr.mxu0 0.0
        %516 = vmatpush2.msra.mxu0 0.0
        %517 = vmatprep.subr.mxu0 0.0
        %518 = vmatpush2.msra.mxu0 0.0
        %519 = vmatprep.subr.mxu0 0.0
        %520 = vmatpush2.msra.mxu0 0.0
        %521 = vmatprep.subr.mxu0 0.0
        %522 = vmatpush2.msra.mxu0 0.0
        %523 = vmatprep.subr.mxu0 0.0
        %524 = vmatpush2.msra.mxu0 0.0
        %525 = vmatprep.subr.mxu0 0.0
        %526 = vmatpush2.msra.mxu0 0.0
        %527 = vmatprep.subr.mxu0 0.0
        %528 = vmatpush2.msra.mxu0 0.0
        %529 = vmatprep.subr.mxu0 0.0
        %530 = vmatpush2.msra.mxu0 0.0
        %531 = vmatprep.subr.mxu0 0.0
        %532 = vmatpush2.msra.mxu0 0.0
        %533 = vmatprep.subr.mxu0 0.0
        %534 = vmatpush2.msra.mxu0 0.0
        %535 = vmatprep.subr.mxu0 0.0
        %536 = vmatpush2.msra.mxu0 0.0
        %537 = vmatprep.subr.mxu0 0.0
        %538 = vmatpush2.msra.mxu0 0.0
        %539 = vmatprep.mubr.f32.mxu0 0.0
        %540 = vmatmul.mubr.f32.gmra.mxu0 %v376
        %v541 = vpop.f32.mrf.mxu0
        %v542 = vadd.f32 %v372, %v541
        %v543 = vpop.f32.mrf.mxu0
        %544 = vmatprep.mubr.f32.mxu0 0.0
        %545 = vmatmul.mubr.f32.gmra.mxu0 %v379
        %v546 = vpop.f32.mrf.mxu0
        %v547 = vadd.f32 %v372, %v546
        %v548 = vpop.f32.mrf.mxu0
        %549 = vmatprep.mubr.f32.mxu0 0.0
        %550 = vmatmul.mubr.f32.gmra.mxu0 %v382
        %v551 = vpop.f32.mrf.mxu0
        %v552 = vadd.f32 %v372, %v551
        %v553 = vpop.f32.mrf.mxu0
        %554 = vmatprep.mubr.f32.mxu0 0.0
        %555 = vmatmul.mubr.f32.gmra.mxu0 %v385
        %v556 = vpop.f32.mrf.mxu0
        %v557 = vadd.f32 %v372, %v556
        %v558 = vpop.f32.mrf.mxu0
        %559 = vmatprep.mubr.f32.mxu0 0.0
        %560 = vmatmul.mubr.f32.gmra.mxu0 %v388
        %v561 = vpop.f32.mrf.mxu0
        %v562 = vadd.f32 %v372, %v561
        %v563 = vpop.f32.mrf.mxu0
        %564 = vmatprep.mubr.f32.mxu0 0.0
        %565 = vmatmul.mubr.f32.gmra.mxu0 %v391
        %v566 = vpop.f32.mrf.mxu0
        %v567 = vadd.f32 %v372, %v566
        %v568 = vpop.f32.mrf.mxu0
        %569 = vmatprep.mubr.f32.mxu0 0.0
        %570 = vmatmul.mubr.f32.gmra.mxu0 %v394
        %v571 = vpop.f32.mrf.mxu0
        %v572 = vadd.f32 %v372, %v571
        %v573 = vpop.f32.mrf.mxu0
        %574 = vmatprep.mubr.f32.mxu0 0.0
        %575 = vmatmul.mubr.f32.gmra.mxu0 %v397
        %v576 = vpop.f32.mrf.mxu0
        %v577 = vadd.f32 %v372, %v576
        %v578 = vpop.f32.mrf.mxu0
        %579 = vmatprep.mubr.f32.mxu0 0.0
        %580 = vmatmul.mubr.f32.gmra.mxu0 %v400
        %v581 = vpop.f32.mrf.mxu0
        %v582 = vadd.f32 %v372, %v581
        %v583 = vpop.f32.mrf.mxu0
        %584 = vmatprep.mubr.f32.mxu0 0.0
        %585 = vmatmul.mubr.f32.gmra.mxu0 %v403
        %v586 = vpop.f32.mrf.mxu0
        %v587 = vadd.f32 %v372, %v586
        %v588 = vpop.f32.mrf.mxu0
        %589 = vmatprep.mubr.f32.mxu0 0.0
        %590 = vmatmul.mubr.f32.gmra.mxu0 %v406
        %v591 = vpop.f32.mrf.mxu0
        %v592 = vadd.f32 %v372, %v591
        %v593 = vpop.f32.mrf.mxu0
        %594 = vmatprep.mubr.f32.mxu0 0.0
        %595 = vmatmul.mubr.f32.gmra.mxu0 %v409
        %v596 = vpop.f32.mrf.mxu0
        %v597 = vadd.f32 %v372, %v596
        %v598 = vpop.f32.mrf.mxu0
        %599 = vmatprep.mubr.f32.mxu0 0.0
        %600 = vmatmul.mubr.f32.gmra.mxu0 %v412
        %v601 = vpop.f32.mrf.mxu0
        %v602 = vadd.f32 %v372, %v601
        %v603 = vpop.f32.mrf.mxu0
        %604 = vmatprep.mubr.f32.mxu0 0.0
        %605 = vmatmul.mubr.f32.gmra.mxu0 %v415
        %v606 = vpop.f32.mrf.mxu0
        %v607 = vadd.f32 %v372, %v606
        %v608 = vpop.f32.mrf.mxu0
        %609 = vmatprep.mubr.f32.mxu0 0.0
        %610 = vmatmul.mubr.f32.gmra.mxu0 %v418
        %v611 = vpop.f32.mrf.mxu0
        %v612 = vadd.f32 %v372, %v611
        %v613 = vpop.f32.mrf.mxu0
        %614 = vmatprep.mubr.f32.mxu0 0.0
        %615 = vmatmul.mubr.f32.gmra.mxu0 %v421
        %v616 = vpop.f32.mrf.mxu0
        %v617 = vadd.f32 %v372, %v616
        %v618 = vpop.f32.mrf.mxu0
        %619 = vmatprep.mubr.f32.mxu0 0.0
        %620 = vmatmul.mubr.f32.gmra.mxu0 %v424
        %v621 = vpop.f32.mrf.mxu0
        %v622 = vadd.f32 %v372, %v621
        %v623 = vpop.f32.mrf.mxu0
        %624 = vmatprep.mubr.f32.mxu0 0.0
        %625 = vmatmul.mubr.f32.gmra.mxu0 %v427
        %v626 = vpop.f32.mrf.mxu0
        %v627 = vadd.f32 %v372, %v626
        %v628 = vpop.f32.mrf.mxu0
        %629 = vmatprep.mubr.f32.mxu0 0.0
        %630 = vmatmul.mubr.f32.gmra.mxu0 %v430
        %v631 = vpop.f32.mrf.mxu0
        %v632 = vadd.f32 %v372, %v631
        %v633 = vpop.f32.mrf.mxu0
        %634 = vmatprep.mubr.f32.mxu0 0.0
        %635 = vmatmul.mubr.f32.gmra.mxu0 %v433
        %v636 = vpop.f32.mrf.mxu0
        %v637 = vadd.f32 %v372, %v636
        %v638 = vpop.f32.mrf.mxu0
        %639 = vmatprep.mubr.f32.mxu0 0.0
        %640 = vmatmul.mubr.f32.gmra.mxu0 %v436
        %v641 = vpop.f32.mrf.mxu0
        %v642 = vadd.f32 %v372, %v641
        %v643 = vpop.f32.mrf.mxu0
        %644 = vmatprep.mubr.f32.mxu0 0.0
        %645 = vmatmul.mubr.f32.gmra.mxu0 %v439
        %v646 = vpop.f32.mrf.mxu0
        %v647 = vadd.f32 %v372, %v646
        %v648 = vpop.f32.mrf.mxu0
        %649 = vmatprep.mubr.f32.mxu0 0.0
        %650 = vmatmul.mubr.f32.gmra.mxu0 %v442
        %v651 = vpop.f32.mrf.mxu0
        %v652 = vadd.f32 %v372, %v651
        %v653 = vpop.f32.mrf.mxu0
        %654 = vmatprep.mubr.f32.mxu0 0.0
        %655 = vmatmul.mubr.f32.gmra.mxu0 %v445
        %v656 = vpop.f32.mrf.mxu0
        %v657 = vadd.f32 %v372, %v656
        %v658 = vpop.f32.mrf.mxu0
        %659 = vmatprep.mubr.f32.mxu0 0.0
        %660 = vmatmul.mubr.f32.gmra.mxu0 %v448
        %v661 = vpop.f32.mrf.mxu0
        %v662 = vadd.f32 %v372, %v661
        %v663 = vpop.f32.mrf.mxu0
        %664 = vmatprep.mubr.f32.mxu0 0.0
        %665 = vmatmul.mubr.f32.gmra.mxu0 %v451
        %v666 = vpop.f32.mrf.mxu0
        %v667 = vadd.f32 %v372, %v666
        %v668 = vpop.f32.mrf.mxu0
        %669 = vmatprep.mubr.f32.mxu0 0.0
        %670 = vmatmul.mubr.f32.gmra.mxu0 %v454
        %v671 = vpop.f32.mrf.mxu0
        %v672 = vadd.f32 %v372, %v671
        %v673 = vpop.f32.mrf.mxu0
        %674 = vmatprep.mubr.f32.mxu0 0.0
        %675 = vmatmul.mubr.f32.gmra.mxu0 %v457
        %v676 = vpop.f32.mrf.mxu0
        %v677 = vadd.f32 %v372, %v676
        %v678 = vpop.f32.mrf.mxu0
        %679 = vmatprep.mubr.f32.mxu0 0.0
        %680 = vmatmul.mubr.f32.gmra.mxu0 %v460
        %v681 = vpop.f32.mrf.mxu0
        %v682 = vadd.f32 %v372, %v681
        %v683 = vpop.f32.mrf.mxu0
        %684 = vmatprep.mubr.f32.mxu0 0.0
        %685 = vmatmul.mubr.f32.gmra.mxu0 %v463
        %v686 = vpop.f32.mrf.mxu0
        %v687 = vadd.f32 %v372, %v686
        %v688 = vpop.f32.mrf.mxu0
        %689 = vmatprep.mubr.f32.mxu0 0.0
        %690 = vmatmul.mubr.f32.gmra.mxu0 %v466
        %v691 = vpop.f32.mrf.mxu0
        %v692 = vadd.f32 %v372, %v691
        %v693 = vpop.f32.mrf.mxu0
        %694 = vmatprep.mubr.f32.mxu0 0.0
        %695 = vmatmul.mubr.f32.gmra.mxu0 %v469
        %v696 = vpop.f32.mrf.mxu0
        %v697 = vadd.f32 %v372, %v696
        %v698 = vpop.f32.mrf.mxu0
        %699 = vdwg.mxu0
        %v700 = vmin.f32 %v542, 0.0
        %v701 = vmin.f32 %v547, 0.0
        %v702 = vmin.f32 %v552, 0.0
        %v703 = vmin.f32 %v557, 0.0
        %v704 = vmin.f32 %v562, 0.0
        %v705 = vmin.f32 %v567, 0.0
        %v706 = vmin.f32 %v572, 0.0
        %v707 = vmin.f32 %v577, 0.0
        %v708 = vmin.f32 %v582, 0.0
        %v709 = vmin.f32 %v587, 0.0
        %v710 = vmin.f32 %v592, 0.0
        %v711 = vmin.f32 %v597, 0.0
        %v712 = vmin.f32 %v602, 0.0
        %v713 = vmin.f32 %v607, 0.0
        %v714 = vmin.f32 %v612, 0.0
        %v715 = vmin.f32 %v617, 0.0
        %v716 = vmin.f32 %v622, 0.0
        %v717 = vmin.f32 %v627, 0.0
        %v718 = vmin.f32 %v632, 0.0
        %v719 = vmin.f32 %v637, 0.0
        %v720 = vmin.f32 %v642, 0.0
        %v721 = vmin.f32 %v647, 0.0
        %v722 = vmin.f32 %v652, 0.0
        %v723 = vmin.f32 %v657, 0.0
        %v724 = vmin.f32 %v662, 0.0
        %v725 = vmin.f32 %v667, 0.0
        %v726 = vmin.f32 %v672, 0.0
        %v727 = vmin.f32 %v677, 0.0
        %v728 = vmin.f32 %v682, 0.0
        %v729 = vmin.f32 %v687, 0.0
        %v730 = vmin.f32 %v692, 0.0
        %v731 = vmin.f32 %v697, 0.0
        %v732 = vmul.f32 %v700, 1.442695
        %v733 = vpow.pop %v732
        %v734 = vmul.f32 %v701, 1.442695
        %v735 = vpow.pop %v734
        %v736 = vmul.f32 %v702, 1.442695
        %v737 = vpow.pop %v736
        %v738 = vmul.f32 %v703, 1.442695
        %v739 = vpow.pop %v738
        %v740 = vmul.f32 %v704, 1.442695
        %v741 = vpow.pop %v740
        %v742 = vmul.f32 %v705, 1.442695
        %v743 = vpow.pop %v742
        %v744 = vmul.f32 %v706, 1.442695
        %v745 = vpow.pop %v744
        %v746 = vmul.f32 %v707, 1.442695
        %v747 = vpow.pop %v746
        %v748 = vmul.f32 %v708, 1.442695
        %v749 = vpow.pop %v748
        %v750 = vmul.f32 %v709, 1.442695
        %v751 = vpow.pop %v750
        %v752 = vmul.f32 %v710, 1.442695
        %v753 = vpow.pop %v752
        %v754 = vmul.f32 %v711, 1.442695
        %v755 = vpow.pop %v754
        %v756 = vmul.f32 %v712, 1.442695
        %v757 = vpow.pop %v756
        %v758 = vmul.f32 %v713, 1.442695
        %v759 = vpow.pop %v758
        %v760 = vmul.f32 %v714, 1.442695
        %v761 = vpow.pop %v760
        %v762 = vmul.f32 %v715, 1.442695
        %v763 = vpow.pop %v762
        %v764 = vmul.f32 %v716, 1.442695
        %v765 = vpow.pop %v764
        %v766 = vmul.f32 %v717, 1.442695
        %v767 = vpow.pop %v766
        %v768 = vmul.f32 %v718, 1.442695
        %v769 = vpow.pop %v768
        %v770 = vmul.f32 %v719, 1.442695
        %v771 = vpow.pop %v770
        %v772 = vmul.f32 %v720, 1.442695
        %v773 = vpow.pop %v772
        %v774 = vmul.f32 %v721, 1.442695
        %v775 = vpow.pop %v774
        %v776 = vmul.f32 %v722, 1.442695
        %v777 = vpow.pop %v776
        %v778 = vmul.f32 %v723, 1.442695
        %v779 = vpow.pop %v778
        %v780 = vmul.f32 %v724, 1.442695
        %v781 = vpow.pop %v780
        %v782 = vmul.f32 %v725, 1.442695
        %v783 = vpow.pop %v782
        %v784 = vmul.f32 %v726, 1.442695
        %v785 = vpow.pop %v784
        %v786 = vmul.f32 %v727, 1.442695
        %v787 = vpow.pop %v786
        %v788 = vmul.f32 %v728, 1.442695
        %v789 = vpow.pop %v788
        %v790 = vmul.f32 %v729, 1.442695
        %v791 = vpow.pop %v790
        %v792 = vmul.f32 %v730, 1.442695
        %v793 = vpow.pop %v792
        %v794 = vmul.f32 %v731, 1.442695
        %v795 = vpow.pop %v794
        %v796 = vsub.f32 %v733, 1.0
        %v797 = vsub.f32 %v735, 1.0
        %v798 = vsub.f32 %v737, 1.0
        %v799 = vsub.f32 %v739, 1.0
        %v800 = vsub.f32 %v741, 1.0
        %v801 = vsub.f32 %v743, 1.0
        %v802 = vsub.f32 %v745, 1.0
        %v803 = vsub.f32 %v747, 1.0
        %v804 = vsub.f32 %v749, 1.0
        %v805 = vsub.f32 %v751, 1.0
        %v806 = vsub.f32 %v753, 1.0
        %v807 = vsub.f32 %v755, 1.0
        %v808 = vsub.f32 %v757, 1.0
        %v809 = vsub.f32 %v759, 1.0
        %v810 = vsub.f32 %v761, 1.0
        %v811 = vsub.f32 %v763, 1.0
        %v812 = vsub.f32 %v765, 1.0
        %v813 = vsub.f32 %v767, 1.0
        %v814 = vsub.f32 %v769, 1.0
        %v815 = vsub.f32 %v771, 1.0
        %v816 = vsub.f32 %v773, 1.0
        %v817 = vsub.f32 %v775, 1.0
        %v818 = vsub.f32 %v777, 1.0
        %v819 = vsub.f32 %v779, 1.0
        %v820 = vsub.f32 %v781, 1.0
        %v821 = vsub.f32 %v783, 1.0
        %v822 = vsub.f32 %v785, 1.0
        %v823 = vsub.f32 %v787, 1.0
        %v824 = vsub.f32 %v789, 1.0
        %v825 = vsub.f32 %v791, 1.0
        %v826 = vsub.f32 %v793, 1.0
        %v827 = vsub.f32 %v795, 1.0
        %vm828 = vcmp.gt.f32.partialorder %v542, 0.0
        %vm829 = vcmp.gt.f32.partialorder %v547, 0.0
        %vm830 = vcmp.gt.f32.partialorder %v552, 0.0
        %vm831 = vcmp.gt.f32.partialorder %v557, 0.0
        %vm832 = vcmp.gt.f32.partialorder %v562, 0.0
        %vm833 = vcmp.gt.f32.partialorder %v567, 0.0
        %vm834 = vcmp.gt.f32.partialorder %v572, 0.0
        %vm835 = vcmp.gt.f32.partialorder %v577, 0.0
        %vm836 = vcmp.gt.f32.partialorder %v582, 0.0
        %vm837 = vcmp.gt.f32.partialorder %v587, 0.0
        %vm838 = vcmp.gt.f32.partialorder %v592, 0.0
        %vm839 = vcmp.gt.f32.partialorder %v597, 0.0
        %vm840 = vcmp.gt.f32.partialorder %v602, 0.0
        %vm841 = vcmp.gt.f32.partialorder %v607, 0.0
        %vm842 = vcmp.gt.f32.partialorder %v612, 0.0
        %vm843 = vcmp.gt.f32.partialorder %v617, 0.0
        %vm844 = vcmp.gt.f32.partialorder %v622, 0.0
        %vm845 = vcmp.gt.f32.partialorder %v627, 0.0
        %vm846 = vcmp.gt.f32.partialorder %v632, 0.0
        %vm847 = vcmp.gt.f32.partialorder %v637, 0.0
        %vm848 = vcmp.gt.f32.partialorder %v642, 0.0
        %vm849 = vcmp.gt.f32.partialorder %v647, 0.0
        %vm850 = vcmp.gt.f32.partialorder %v652, 0.0
        %vm851 = vcmp.gt.f32.partialorder %v657, 0.0
        %vm852 = vcmp.gt.f32.partialorder %v662, 0.0
        %vm853 = vcmp.gt.f32.partialorder %v667, 0.0
        %vm854 = vcmp.gt.f32.partialorder %v672, 0.0
        %vm855 = vcmp.gt.f32.partialorder %v677, 0.0
        %vm856 = vcmp.gt.f32.partialorder %v682, 0.0
        %vm857 = vcmp.gt.f32.partialorder %v687, 0.0
        %vm858 = vcmp.gt.f32.partialorder %v692, 0.0
        %vm859 = vcmp.gt.f32.partialorder %v697, 0.0
        %v860 = vmul.f32 %v796, 1.6732632
        %v861 = vmul.f32 %v797, 1.6732632
        %v862 = vmul.f32 %v798, 1.6732632
        %v863 = vmul.f32 %v799, 1.6732632
        %v864 = vmul.f32 %v800, 1.6732632
        %v865 = vmul.f32 %v801, 1.6732632
        %v866 = vmul.f32 %v802, 1.6732632
        %v867 = vmul.f32 %v803, 1.6732632
        %v868 = vmul.f32 %v804, 1.6732632
        %v869 = vmul.f32 %v805, 1.6732632
        %v870 = vmul.f32 %v806, 1.6732632
        %v871 = vmul.f32 %v807, 1.6732632
        %v872 = vmul.f32 %v808, 1.6732632
        %v873 = vmul.f32 %v809, 1.6732632
        %v874 = vmul.f32 %v810, 1.6732632
        %v875 = vmul.f32 %v811, 1.6732632
        %v876 = vmul.f32 %v812, 1.6732632
        %v877 = vmul.f32 %v813, 1.6732632
        %v878 = vmul.f32 %v814, 1.6732632
        %v879 = vmul.f32 %v815, 1.6732632
        %v880 = vmul.f32 %v816, 1.6732632
        %v881 = vmul.f32 %v817, 1.6732632
        %v882 = vmul.f32 %v818, 1.6732632
        %v883 = vmul.f32 %v819, 1.6732632
        %v884 = vmul.f32 %v820, 1.6732632
        %v885 = vmul.f32 %v821, 1.6732632
        %v886 = vmul.f32 %v822, 1.6732632
        %v887 = vmul.f32 %v823, 1.6732632
        %v888 = vmul.f32 %v824, 1.6732632
        %v889 = vmul.f32 %v825, 1.6732632
        %v890 = vmul.f32 %v826, 1.6732632
        %v891 = vmul.f32 %v827, 1.6732632
        %v892 = vsel %vm828, %v542, %v860
        %v893 = vsel %vm829, %v547, %v861
        %v894 = vsel %vm830, %v552, %v862
        %v895 = vsel %vm831, %v557, %v863
        %v896 = vsel %vm832, %v562, %v864
        %v897 = vsel %vm833, %v567, %v865
        %v898 = vsel %vm834, %v572, %v866
        %v899 = vsel %vm835, %v577, %v867
        %v900 = vsel %vm836, %v582, %v868
        %v901 = vsel %vm837, %v587, %v869
        %v902 = vsel %vm838, %v592, %v870
        %v903 = vsel %vm839, %v597, %v871
        %v904 = vsel %vm840, %v602, %v872
        %v905 = vsel %vm841, %v607, %v873
        %v906 = vsel %vm842, %v612, %v874
        %v907 = vsel %vm843, %v617, %v875
        %v908 = vsel %vm844, %v622, %v876
        %v909 = vsel %vm845, %v627, %v877
        %v910 = vsel %vm846, %v632, %v878
        %v911 = vsel %vm847, %v637, %v879
        %v912 = vsel %vm848, %v642, %v880
        %v913 = vsel %vm849, %v647, %v881
        %v914 = vsel %vm850, %v652, %v882
        %v915 = vsel %vm851, %v657, %v883
        %v916 = vsel %vm852, %v662, %v884
        %v917 = vsel %vm853, %v667, %v885
        %v918 = vsel %vm854, %v672, %v886
        %v919 = vsel %vm855, %v677, %v887
        %v920 = vsel %vm856, %v682, %v888
        %v921 = vsel %vm857, %v687, %v889
        %v922 = vsel %vm858, %v692, %v890
        %v923 = vsel %vm859, %v697, %v891
        %v924 = vmul.f32 %v892, 1.050701
        %v925 = vmul.f32 %v893, 1.050701
        %v926 = vmul.f32 %v894, 1.050701
        %v927 = vmul.f32 %v895, 1.050701
        %v928 = vmul.f32 %v896, 1.050701
        %v929 = vmul.f32 %v897, 1.050701
        %v930 = vmul.f32 %v898, 1.050701
        %v931 = vmul.f32 %v899, 1.050701
        %v932 = vmul.f32 %v900, 1.050701
        %v933 = vmul.f32 %v901, 1.050701
        %v934 = vmul.f32 %v902, 1.050701
        %v935 = vmul.f32 %v903, 1.050701
        %v936 = vmul.f32 %v904, 1.050701
        %v937 = vmul.f32 %v905, 1.050701
        %v938 = vmul.f32 %v906, 1.050701
        %v939 = vmul.f32 %v907, 1.050701
        %v940 = vmul.f32 %v908, 1.050701
        %v941 = vmul.f32 %v909, 1.050701
        %v942 = vmul.f32 %v910, 1.050701
        %v943 = vmul.f32 %v911, 1.050701
        %v944 = vmul.f32 %v912, 1.050701
        %v945 = vmul.f32 %v913, 1.050701
        %v946 = vmul.f32 %v914, 1.050701
        %v947 = vmul.f32 %v915, 1.050701
        %v948 = vmul.f32 %v916, 1.050701
        %v949 = vmul.f32 %v917, 1.050701
        %v950 = vmul.f32 %v918, 1.050701
        %v951 = vmul.f32 %v919, 1.050701
        %v952 = vmul.f32 %v920, 1.050701
        %v953 = vmul.f32 %v921, 1.050701
        %v954 = vmul.f32 %v922, 1.050701
        %v955 = vmul.f32 %v923, 1.050701
        %v956 = vld [vmem:[%s3] sm:$0xff]
        %v957 = vld [vmem:[%s3 + $0x8] sm:$0xff]
        %v958 = vld [vmem:[%s3 + $0x10] sm:$0xff]
        %v959 = vld [vmem:[%s3 + $0x18] sm:$0xff]
        %v960 = vld [vmem:[%s3 + $0x20] sm:$0xff]
        %v961 = vld [vmem:[%s3 + $0x28] sm:$0xff]
        %v962 = vld [vmem:[%s3 + $0x30] sm:$0xff]
        %v963 = vld [vmem:[%s3 + $0x38] sm:$0xff]
        %v964 = vld [vmem:[%s3 + $0x40] sm:$0xff]
        %v965 = vld [vmem:[%s3 + $0x48] sm:$0xff]
        %v966 = vld [vmem:[%s3 + $0x50] sm:$0xff]
        %v967 = vld [vmem:[%s3 + $0x58] sm:$0xff]
        %v968 = vld [vmem:[%s3 + $0x60] sm:$0xf]
        %v969 = vld [vmem:[%s4] sm:$0x1]
        %v971 = vlaneseq
        %v972 = vshrl.u32 %v971, 7
        %v973 = vsub.s32 0, %v972
        %v974 = vrot.slane %v969, %v973
        %vm976 = vcmask 818176
        %v978 = vsel %vm976, %v924, 0
        %v981 = vsel %vm976, %v925, 0
        %v984 = vsel %vm976, %v926, 0
        %v987 = vsel %vm976, %v927, 0
        %v990 = vsel %vm976, %v928, 0
        %v993 = vsel %vm976, %v929, 0
        %v996 = vsel %vm976, %v930, 0
        %v999 = vsel %vm976, %v931, 0
        %v1002 = vsel %vm976, %v932, 0
        %v1005 = vsel %vm976, %v933, 0
        %v1008 = vsel %vm976, %v934, 0
        %v1011 = vsel %vm976, %v935, 0
        %v1014 = vsel %vm976, %v936, 0
        %v1017 = vsel %vm976, %v937, 0
        %v1020 = vsel %vm976, %v938, 0
        %v1023 = vsel %vm976, %v939, 0
        %v1026 = vsel %vm976, %v940, 0
        %v1029 = vsel %vm976, %v941, 0
        %v1032 = vsel %vm976, %v942, 0
        %v1035 = vsel %vm976, %v943, 0
        %v1038 = vsel %vm976, %v944, 0
        %v1041 = vsel %vm976, %v945, 0
        %v1044 = vsel %vm976, %v946, 0
        %v1047 = vsel %vm976, %v947, 0
        %v1050 = vsel %vm976, %v948, 0
        %v1053 = vsel %vm976, %v949, 0
        %v1056 = vsel %vm976, %v950, 0
        %v1059 = vsel %vm976, %v951, 0
        %v1062 = vsel %vm976, %v952, 0
        %v1065 = vsel %vm976, %v953, 0
        %v1068 = vsel %vm976, %v954, 0
        %v1071 = vsel %vm976, %v955, 0
        %vm1073 = vcmask 1043456
        %v1075 = vsel %vm1073, %v968, 0
        %1077 = vmatprep.subr.mxu0 0.0
        %1078 = vmatpush1.msra.mxu0 0.0
        %1079 = vmatprep.subr.mxu0 0.0
        %1080 = vmatpush1.msra.mxu0 0.0
        %1081 = vmatprep.subr.mxu0 0.0
        %1082 = vmatpush1.msra.mxu0 0.0
        %1083 = vmatprep.subr.mxu0 0.0
        %1084 = vmatpush1.msra.mxu0 %v1075
        %1085 = vmatprep.subr.mxu0 0.0
        %1086 = vmatpush1.msra.mxu0 %v967
        %1087 = vmatprep.subr.mxu0 0.0
        %1088 = vmatpush1.msra.mxu0 %v966
        %1089 = vmatprep.subr.mxu0 0.0
        %1090 = vmatpush1.msra.mxu0 %v965
        %1091 = vmatprep.subr.mxu0 0.0
        %1092 = vmatpush1.msra.mxu0 %v964
        %1093 = vmatprep.subr.mxu0 0.0
        %1094 = vmatpush1.msra.mxu0 %v963
        %1095 = vmatprep.subr.mxu0 0.0
        %1096 = vmatpush1.msra.mxu0 %v962
        %1097 = vmatprep.subr.mxu0 0.0
        %1098 = vmatpush1.msra.mxu0 %v961
        %1099 = vmatprep.subr.mxu0 0.0
        %1100 = vmatpush1.msra.mxu0 %v960
        %1101 = vmatprep.subr.mxu0 0.0
        %1102 = vmatpush1.msra.mxu0 %v959
        %1103 = vmatprep.subr.mxu0 0.0
        %1104 = vmatpush1.msra.mxu0 %v958
        %1105 = vmatprep.subr.mxu0 0.0
        %1106 = vmatpush1.msra.mxu0 %v957
        %1107 = vmatprep.subr.mxu0 0.0
        %1108 = vmatpush1.msra.mxu0 %v956
        %1109 = vmatprep.subr.mxu0 0.0
        %1110 = vmatpush2.msra.mxu0 0.0
        %1111 = vmatprep.subr.mxu0 0.0
        %1112 = vmatpush2.msra.mxu0 0.0
        %1113 = vmatprep.subr.mxu0 0.0
        %1114 = vmatpush2.msra.mxu0 0.0
        %1115 = vmatprep.subr.mxu0 0.0
        %1116 = vmatpush2.msra.mxu0 0.0
        %1117 = vmatprep.subr.mxu0 0.0
        %1118 = vmatpush2.msra.mxu0 0.0
        %1119 = vmatprep.subr.mxu0 0.0
        %1120 = vmatpush2.msra.mxu0 0.0
        %1121 = vmatprep.subr.mxu0 0.0
        %1122 = vmatpush2.msra.mxu0 0.0
        %1123 = vmatprep.subr.mxu0 0.0
        %1124 = vmatpush2.msra.mxu0 0.0
        %1125 = vmatprep.subr.mxu0 0.0
        %1126 = vmatpush2.msra.mxu0 0.0
        %1127 = vmatprep.subr.mxu0 0.0
        %1128 = vmatpush2.msra.mxu0 0.0
        %1129 = vmatprep.subr.mxu0 0.0
        %1130 = vmatpush2.msra.mxu0 0.0
        %1131 = vmatprep.subr.mxu0 0.0
        %1132 = vmatpush2.msra.mxu0 0.0
        %1133 = vmatprep.subr.mxu0 0.0
        %1134 = vmatpush2.msra.mxu0 0.0
        %1135 = vmatprep.subr.mxu0 0.0
        %1136 = vmatpush2.msra.mxu0 0.0
        %1137 = vmatprep.subr.mxu0 0.0
        %1138 = vmatpush2.msra.mxu0 0.0
        %1139 = vmatprep.subr.mxu0 0.0
        %1140 = vmatpush2.msra.mxu0 0.0
        %1141 = vmatprep.mubr.f32.mxu0 0.0
        %1142 = vmatmul.mubr.f32.gmra.mxu0 %v978
        %v1143 = vpop.f32.mrf.mxu0
        %v1144 = vadd.f32 %v974, %v1143
        %v1145 = vpop.f32.mrf.mxu0
        %1146 = vmatprep.mubr.f32.mxu0 0.0
        %1147 = vmatmul.mubr.f32.gmra.mxu0 %v981
        %v1148 = vpop.f32.mrf.mxu0
        %v1149 = vadd.f32 %v974, %v1148
        %v1150 = vpop.f32.mrf.mxu0
        %1151 = vmatprep.mubr.f32.mxu0 0.0
        %1152 = vmatmul.mubr.f32.gmra.mxu0 %v984
        %v1153 = vpop.f32.mrf.mxu0
        %v1154 = vadd.f32 %v974, %v1153
        %v1155 = vpop.f32.mrf.mxu0
        %1156 = vmatprep.mubr.f32.mxu0 0.0
        %1157 = vmatmul.mubr.f32.gmra.mxu0 %v987
        %v1158 = vpop.f32.mrf.mxu0
        %v1159 = vadd.f32 %v974, %v1158
        %v1160 = vpop.f32.mrf.mxu0
        %1161 = vmatprep.mubr.f32.mxu0 0.0
        %1162 = vmatmul.mubr.f32.gmra.mxu0 %v990
        %v1163 = vpop.f32.mrf.mxu0
        %v1164 = vadd.f32 %v974, %v1163
        %v1165 = vpop.f32.mrf.mxu0
        %1166 = vmatprep.mubr.f32.mxu0 0.0
        %1167 = vmatmul.mubr.f32.gmra.mxu0 %v993
        %v1168 = vpop.f32.mrf.mxu0
        %v1169 = vadd.f32 %v974, %v1168
        %v1170 = vpop.f32.mrf.mxu0
        %1171 = vmatprep.mubr.f32.mxu0 0.0
        %1172 = vmatmul.mubr.f32.gmra.mxu0 %v996
        %v1173 = vpop.f32.mrf.mxu0
        %v1174 = vadd.f32 %v974, %v1173
        %v1175 = vpop.f32.mrf.mxu0
        %1176 = vmatprep.mubr.f32.mxu0 0.0
        %1177 = vmatmul.mubr.f32.gmra.mxu0 %v999
        %v1178 = vpop.f32.mrf.mxu0
        %v1179 = vadd.f32 %v974, %v1178
        %v1180 = vpop.f32.mrf.mxu0
        %1181 = vmatprep.mubr.f32.mxu0 0.0
        %1182 = vmatmul.mubr.f32.gmra.mxu0 %v1002
        %v1183 = vpop.f32.mrf.mxu0
        %v1184 = vadd.f32 %v974, %v1183
        %v1185 = vpop.f32.mrf.mxu0
        %1186 = vmatprep.mubr.f32.mxu0 0.0
        %1187 = vmatmul.mubr.f32.gmra.mxu0 %v1005
        %v1188 = vpop.f32.mrf.mxu0
        %v1189 = vadd.f32 %v974, %v1188
        %v1190 = vpop.f32.mrf.mxu0
        %1191 = vmatprep.mubr.f32.mxu0 0.0
        %1192 = vmatmul.mubr.f32.gmra.mxu0 %v1008
        %v1193 = vpop.f32.mrf.mxu0
        %v1194 = vadd.f32 %v974, %v1193
        %v1195 = vpop.f32.mrf.mxu0
        %1196 = vmatprep.mubr.f32.mxu0 0.0
        %1197 = vmatmul.mubr.f32.gmra.mxu0 %v1011
        %v1198 = vpop.f32.mrf.mxu0
        %v1199 = vadd.f32 %v974, %v1198
        %v1200 = vpop.f32.mrf.mxu0
        %1201 = vmatprep.mubr.f32.mxu0 0.0
        %1202 = vmatmul.mubr.f32.gmra.mxu0 %v1014
        %v1203 = vpop.f32.mrf.mxu0
        %v1204 = vadd.f32 %v974, %v1203
        %v1205 = vpop.f32.mrf.mxu0
        %1206 = vmatprep.mubr.f32.mxu0 0.0
        %1207 = vmatmul.mubr.f32.gmra.mxu0 %v1017
        %v1208 = vpop.f32.mrf.mxu0
        %v1209 = vadd.f32 %v974, %v1208
        %v1210 = vpop.f32.mrf.mxu0
        %1211 = vmatprep.mubr.f32.mxu0 0.0
        %1212 = vmatmul.mubr.f32.gmra.mxu0 %v1020
        %v1213 = vpop.f32.mrf.mxu0
        %v1214 = vadd.f32 %v974, %v1213
        %v1215 = vpop.f32.mrf.mxu0
        %1216 = vmatprep.mubr.f32.mxu0 0.0
        %1217 = vmatmul.mubr.f32.gmra.mxu0 %v1023
        %v1218 = vpop.f32.mrf.mxu0
        %v1219 = vadd.f32 %v974, %v1218
        %v1220 = vpop.f32.mrf.mxu0
        %1221 = vmatprep.mubr.f32.mxu0 0.0
        %1222 = vmatmul.mubr.f32.gmra.mxu0 %v1026
        %v1223 = vpop.f32.mrf.mxu0
        %v1224 = vadd.f32 %v974, %v1223
        %v1225 = vpop.f32.mrf.mxu0
        %1226 = vmatprep.mubr.f32.mxu0 0.0
        %1227 = vmatmul.mubr.f32.gmra.mxu0 %v1029
        %v1228 = vpop.f32.mrf.mxu0
        %v1229 = vadd.f32 %v974, %v1228
        %v1230 = vpop.f32.mrf.mxu0
        %1231 = vmatprep.mubr.f32.mxu0 0.0
        %1232 = vmatmul.mubr.f32.gmra.mxu0 %v1032
        %v1233 = vpop.f32.mrf.mxu0
        %v1234 = vadd.f32 %v974, %v1233
        %v1235 = vpop.f32.mrf.mxu0
        %1236 = vmatprep.mubr.f32.mxu0 0.0
        %1237 = vmatmul.mubr.f32.gmra.mxu0 %v1035
        %v1238 = vpop.f32.mrf.mxu0
        %v1239 = vadd.f32 %v974, %v1238
        %v1240 = vpop.f32.mrf.mxu0
        %1241 = vmatprep.mubr.f32.mxu0 0.0
        %1242 = vmatmul.mubr.f32.gmra.mxu0 %v1038
        %v1243 = vpop.f32.mrf.mxu0
        %v1244 = vadd.f32 %v974, %v1243
        %v1245 = vpop.f32.mrf.mxu0
        %1246 = vmatprep.mubr.f32.mxu0 0.0
        %1247 = vmatmul.mubr.f32.gmra.mxu0 %v1041
        %v1248 = vpop.f32.mrf.mxu0
        %v1249 = vadd.f32 %v974, %v1248
        %v1250 = vpop.f32.mrf.mxu0
        %1251 = vmatprep.mubr.f32.mxu0 0.0
        %1252 = vmatmul.mubr.f32.gmra.mxu0 %v1044
        %v1253 = vpop.f32.mrf.mxu0
        %v1254 = vadd.f32 %v974, %v1253
        %v1255 = vpop.f32.mrf.mxu0
        %1256 = vmatprep.mubr.f32.mxu0 0.0
        %1257 = vmatmul.mubr.f32.gmra.mxu0 %v1047
        %v1258 = vpop.f32.mrf.mxu0
        %v1259 = vadd.f32 %v974, %v1258
        %v1260 = vpop.f32.mrf.mxu0
        %1261 = vmatprep.mubr.f32.mxu0 0.0
        %1262 = vmatmul.mubr.f32.gmra.mxu0 %v1050
        %v1263 = vpop.f32.mrf.mxu0
        %v1264 = vadd.f32 %v974, %v1263
        %v1265 = vpop.f32.mrf.mxu0
        %1266 = vmatprep.mubr.f32.mxu0 0.0
        %1267 = vmatmul.mubr.f32.gmra.mxu0 %v1053
        %v1268 = vpop.f32.mrf.mxu0
        %v1269 = vadd.f32 %v974, %v1268
        %v1270 = vpop.f32.mrf.mxu0
        %1271 = vmatprep.mubr.f32.mxu0 0.0
        %1272 = vmatmul.mubr.f32.gmra.mxu0 %v1056
        %v1273 = vpop.f32.mrf.mxu0
        %v1274 = vadd.f32 %v974, %v1273
        %v1275 = vpop.f32.mrf.mxu0
        %1276 = vmatprep.mubr.f32.mxu0 0.0
        %1277 = vmatmul.mubr.f32.gmra.mxu0 %v1059
        %v1278 = vpop.f32.mrf.mxu0
        %v1279 = vadd.f32 %v974, %v1278
        %v1280 = vpop.f32.mrf.mxu0
        %1281 = vmatprep.mubr.f32.mxu0 0.0
        %1282 = vmatmul.mubr.f32.gmra.mxu0 %v1062
        %v1283 = vpop.f32.mrf.mxu0
        %v1284 = vadd.f32 %v974, %v1283
        %v1285 = vpop.f32.mrf.mxu0
        %1286 = vmatprep.mubr.f32.mxu0 0.0
        %1287 = vmatmul.mubr.f32.gmra.mxu0 %v1065
        %v1288 = vpop.f32.mrf.mxu0
        %v1289 = vadd.f32 %v974, %v1288
        %v1290 = vpop.f32.mrf.mxu0
        %1291 = vmatprep.mubr.f32.mxu0 0.0
        %1292 = vmatmul.mubr.f32.gmra.mxu0 %v1068
        %v1293 = vpop.f32.mrf.mxu0
        %v1294 = vadd.f32 %v974, %v1293
        %v1295 = vpop.f32.mrf.mxu0
        %1296 = vmatprep.mubr.f32.mxu0 0.0
        %1297 = vmatmul.mubr.f32.gmra.mxu0 %v1071
        %v1298 = vpop.f32.mrf.mxu0
        %v1299 = vadd.f32 %v974, %v1298
        %v1300 = vpop.f32.mrf.mxu0
        %1301 = vdwg.mxu0
        %v1302 = vmin.f32 %v1144, 0.0
        %v1303 = vmin.f32 %v1149, 0.0
        %v1304 = vmin.f32 %v1154, 0.0
        %v1305 = vmin.f32 %v1159, 0.0
        %v1306 = vmin.f32 %v1164, 0.0
        %v1307 = vmin.f32 %v1169, 0.0
        %v1308 = vmin.f32 %v1174, 0.0
        %v1309 = vmin.f32 %v1179, 0.0
        %v1310 = vmin.f32 %v1184, 0.0
        %v1311 = vmin.f32 %v1189, 0.0
        %v1312 = vmin.f32 %v1194, 0.0
        %v1313 = vmin.f32 %v1199, 0.0
        %v1314 = vmin.f32 %v1204, 0.0
        %v1315 = vmin.f32 %v1209, 0.0
        %v1316 = vmin.f32 %v1214, 0.0
        %v1317 = vmin.f32 %v1219, 0.0
        %v1318 = vmin.f32 %v1224, 0.0
        %v1319 = vmin.f32 %v1229, 0.0
        %v1320 = vmin.f32 %v1234, 0.0
        %v1321 = vmin.f32 %v1239, 0.0
        %v1322 = vmin.f32 %v1244, 0.0
        %v1323 = vmin.f32 %v1249, 0.0
        %v1324 = vmin.f32 %v1254, 0.0
        %v1325 = vmin.f32 %v1259, 0.0
        %v1326 = vmin.f32 %v1264, 0.0
        %v1327 = vmin.f32 %v1269, 0.0
        %v1328 = vmin.f32 %v1274, 0.0
        %v1329 = vmin.f32 %v1279, 0.0
        %v1330 = vmin.f32 %v1284, 0.0
        %v1331 = vmin.f32 %v1289, 0.0
        %v1332 = vmin.f32 %v1294, 0.0
        %v1333 = vmin.f32 %v1299, 0.0
        %v1334 = vmul.f32 %v1302, 1.442695
        %v1335 = vpow.pop %v1334
        %v1336 = vmul.f32 %v1303, 1.442695
        %v1337 = vpow.pop %v1336
        %v1338 = vmul.f32 %v1304, 1.442695
        %v1339 = vpow.pop %v1338
        %v1340 = vmul.f32 %v1305, 1.442695
        %v1341 = vpow.pop %v1340
        %v1342 = vmul.f32 %v1306, 1.442695
        %v1343 = vpow.pop %v1342
        %v1344 = vmul.f32 %v1307, 1.442695
        %v1345 = vpow.pop %v1344
        %v1346 = vmul.f32 %v1308, 1.442695
        %v1347 = vpow.pop %v1346
        %v1348 = vmul.f32 %v1309, 1.442695
        %v1349 = vpow.pop %v1348
        %v1350 = vmul.f32 %v1310, 1.442695
        %v1351 = vpow.pop %v1350
        %v1352 = vmul.f32 %v1311, 1.442695
        %v1353 = vpow.pop %v1352
        %v1354 = vmul.f32 %v1312, 1.442695
        %v1355 = vpow.pop %v1354
        %v1356 = vmul.f32 %v1313, 1.442695
        %v1357 = vpow.pop %v1356
        %v1358 = vmul.f32 %v1314, 1.442695
        %v1359 = vpow.pop %v1358
        %v1360 = vmul.f32 %v1315, 1.442695
        %v1361 = vpow.pop %v1360
        %v1362 = vmul.f32 %v1316, 1.442695
        %v1363 = vpow.pop %v1362
        %v1364 = vmul.f32 %v1317, 1.442695
        %v1365 = vpow.pop %v1364
        %v1366 = vmul.f32 %v1318, 1.442695
        %v1367 = vpow.pop %v1366
        %v1368 = vmul.f32 %v1319, 1.442695
        %v1369 = vpow.pop %v1368
        %v1370 = vmul.f32 %v1320, 1.442695
        %v1371 = vpow.pop %v1370
        %v1372 = vmul.f32 %v1321, 1.442695
        %v1373 = vpow.pop %v1372
        %v1374 = vmul.f32 %v1322, 1.442695
        %v1375 = vpow.pop %v1374
        %v1376 = vmul.f32 %v1323, 1.442695
        %v1377 = vpow.pop %v1376
        %v1378 = vmul.f32 %v1324, 1.442695
        %v1379 = vpow.pop %v1378
        %v1380 = vmul.f32 %v1325, 1.442695
        %v1381 = vpow.pop %v1380
        %v1382 = vmul.f32 %v1326, 1.442695
        %v1383 = vpow.pop %v1382
        %v1384 = vmul.f32 %v1327, 1.442695
        %v1385 = vpow.pop %v1384
        %v1386 = vmul.f32 %v1328, 1.442695
        %v1387 = vpow.pop %v1386
        %v1388 = vmul.f32 %v1329, 1.442695
        %v1389 = vpow.pop %v1388
        %v1390 = vmul.f32 %v1330, 1.442695
        %v1391 = vpow.pop %v1390
        %v1392 = vmul.f32 %v1331, 1.442695
        %v1393 = vpow.pop %v1392
        %v1394 = vmul.f32 %v1332, 1.442695
        %v1395 = vpow.pop %v1394
        %v1396 = vmul.f32 %v1333, 1.442695
        %v1397 = vpow.pop %v1396
        %v1398 = vsub.f32 %v1335, 1.0
        %v1399 = vsub.f32 %v1337, 1.0
        %v1400 = vsub.f32 %v1339, 1.0
        %v1401 = vsub.f32 %v1341, 1.0
        %v1402 = vsub.f32 %v1343, 1.0
        %v1403 = vsub.f32 %v1345, 1.0
        %v1404 = vsub.f32 %v1347, 1.0
        %v1405 = vsub.f32 %v1349, 1.0
        %v1406 = vsub.f32 %v1351, 1.0
        %v1407 = vsub.f32 %v1353, 1.0
        %v1408 = vsub.f32 %v1355, 1.0
        %v1409 = vsub.f32 %v1357, 1.0
        %v1410 = vsub.f32 %v1359, 1.0
        %v1411 = vsub.f32 %v1361, 1.0
        %v1412 = vsub.f32 %v1363, 1.0
        %v1413 = vsub.f32 %v1365, 1.0
        %v1414 = vsub.f32 %v1367, 1.0
        %v1415 = vsub.f32 %v1369, 1.0
        %v1416 = vsub.f32 %v1371, 1.0
        %v1417 = vsub.f32 %v1373, 1.0
        %v1418 = vsub.f32 %v1375, 1.0
        %v1419 = vsub.f32 %v1377, 1.0
        %v1420 = vsub.f32 %v1379, 1.0
        %v1421 = vsub.f32 %v1381, 1.0
        %v1422 = vsub.f32 %v1383, 1.0
        %v1423 = vsub.f32 %v1385, 1.0
        %v1424 = vsub.f32 %v1387, 1.0
        %v1425 = vsub.f32 %v1389, 1.0
        %v1426 = vsub.f32 %v1391, 1.0
        %v1427 = vsub.f32 %v1393, 1.0
        %v1428 = vsub.f32 %v1395, 1.0
        %v1429 = vsub.f32 %v1397, 1.0
        %vm1430 = vcmp.gt.f32.partialorder %v1144, 0.0
        %vm1431 = vcmp.gt.f32.partialorder %v1149, 0.0
        %vm1432 = vcmp.gt.f32.partialorder %v1154, 0.0
        %vm1433 = vcmp.gt.f32.partialorder %v1159, 0.0
        %vm1434 = vcmp.gt.f32.partialorder %v1164, 0.0
        %vm1435 = vcmp.gt.f32.partialorder %v1169, 0.0
        %vm1436 = vcmp.gt.f32.partialorder %v1174, 0.0
        %vm1437 = vcmp.gt.f32.partialorder %v1179, 0.0
        %vm1438 = vcmp.gt.f32.partialorder %v1184, 0.0
        %vm1439 = vcmp.gt.f32.partialorder %v1189, 0.0
        %vm1440 = vcmp.gt.f32.partialorder %v1194, 0.0
        %vm1441 = vcmp.gt.f32.partialorder %v1199, 0.0
        %vm1442 = vcmp.gt.f32.partialorder %v1204, 0.0
        %vm1443 = vcmp.gt.f32.partialorder %v1209, 0.0
        %vm1444 = vcmp.gt.f32.partialorder %v1214, 0.0
        %vm1445 = vcmp.gt.f32.partialorder %v1219, 0.0
        %vm1446 = vcmp.gt.f32.partialorder %v1224, 0.0
        %vm1447 = vcmp.gt.f32.partialorder %v1229, 0.0
        %vm1448 = vcmp.gt.f32.partialorder %v1234, 0.0
        %vm1449 = vcmp.gt.f32.partialorder %v1239, 0.0
        %vm1450 = vcmp.gt.f32.partialorder %v1244, 0.0
        %vm1451 = vcmp.gt.f32.partialorder %v1249, 0.0
        %vm1452 = vcmp.gt.f32.partialorder %v1254, 0.0
        %vm1453 = vcmp.gt.f32.partialorder %v1259, 0.0
        %vm1454 = vcmp.gt.f32.partialorder %v1264, 0.0
        %vm1455 = vcmp.gt.f32.partialorder %v1269, 0.0
        %vm1456 = vcmp.gt.f32.partialorder %v1274, 0.0
        %vm1457 = vcmp.gt.f32.partialorder %v1279, 0.0
        %vm1458 = vcmp.gt.f32.partialorder %v1284, 0.0
        %vm1459 = vcmp.gt.f32.partialorder %v1289, 0.0
        %vm1460 = vcmp.gt.f32.partialorder %v1294, 0.0
        %vm1461 = vcmp.gt.f32.partialorder %v1299, 0.0
        %v1462 = vmul.f32 %v1398, 1.6732632
        %v1463 = vmul.f32 %v1399, 1.6732632
        %v1464 = vmul.f32 %v1400, 1.6732632
        %v1465 = vmul.f32 %v1401, 1.6732632
        %v1466 = vmul.f32 %v1402, 1.6732632
        %v1467 = vmul.f32 %v1403, 1.6732632
        %v1468 = vmul.f32 %v1404, 1.6732632
        %v1469 = vmul.f32 %v1405, 1.6732632
        %v1470 = vmul.f32 %v1406, 1.6732632
        %v1471 = vmul.f32 %v1407, 1.6732632
        %v1472 = vmul.f32 %v1408, 1.6732632
        %v1473 = vmul.f32 %v1409, 1.6732632
        %v1474 = vmul.f32 %v1410, 1.6732632
        %v1475 = vmul.f32 %v1411, 1.6732632
        %v1476 = vmul.f32 %v1412, 1.6732632
        %v1477 = vmul.f32 %v1413, 1.6732632
        %v1478 = vmul.f32 %v1414, 1.6732632
        %v1479 = vmul.f32 %v1415, 1.6732632
        %v1480 = vmul.f32 %v1416, 1.6732632
        %v1481 = vmul.f32 %v1417, 1.6732632
        %v1482 = vmul.f32 %v1418, 1.6732632
        %v1483 = vmul.f32 %v1419, 1.6732632
        %v1484 = vmul.f32 %v1420, 1.6732632
        %v1485 = vmul.f32 %v1421, 1.6732632
        %v1486 = vmul.f32 %v1422, 1.6732632
        %v1487 = vmul.f32 %v1423, 1.6732632
        %v1488 = vmul.f32 %v1424, 1.6732632
        %v1489 = vmul.f32 %v1425, 1.6732632
        %v1490 = vmul.f32 %v1426, 1.6732632
        %v1491 = vmul.f32 %v1427, 1.6732632
        %v1492 = vmul.f32 %v1428, 1.6732632
        %v1493 = vmul.f32 %v1429, 1.6732632
        %v1494 = vsel %vm1430, %v1144, %v1462
        %v1495 = vsel %vm1431, %v1149, %v1463
        %v1496 = vsel %vm1432, %v1154, %v1464
        %v1497 = vsel %vm1433, %v1159, %v1465
        %v1498 = vsel %vm1434, %v1164, %v1466
        %v1499 = vsel %vm1435, %v1169, %v1467
        %v1500 = vsel %vm1436, %v1174, %v1468
        %v1501 = vsel %vm1437, %v1179, %v1469
        %v1502 = vsel %vm1438, %v1184, %v1470
        %v1503 = vsel %vm1439, %v1189, %v1471
        %v1504 = vsel %vm1440, %v1194, %v1472
        %v1505 = vsel %vm1441, %v1199, %v1473
        %v1506 = vsel %vm1442, %v1204, %v1474
        %v1507 = vsel %vm1443, %v1209, %v1475
        %v1508 = vsel %vm1444, %v1214, %v1476
        %v1509 = vsel %vm1445, %v1219, %v1477
        %v1510 = vsel %vm1446, %v1224, %v1478
        %v1511 = vsel %vm1447, %v1229, %v1479
        %v1512 = vsel %vm1448, %v1234, %v1480
        %v1513 = vsel %vm1449, %v1239, %v1481
        %v1514 = vsel %vm1450, %v1244, %v1482
        %v1515 = vsel %vm1451, %v1249, %v1483
        %v1516 = vsel %vm1452, %v1254, %v1484
        %v1517 = vsel %vm1453, %v1259, %v1485
        %v1518 = vsel %vm1454, %v1264, %v1486
        %v1519 = vsel %vm1455, %v1269, %v1487
        %v1520 = vsel %vm1456, %v1274, %v1488
        %v1521 = vsel %vm1457, %v1279, %v1489
        %v1522 = vsel %vm1458, %v1284, %v1490
        %v1523 = vsel %vm1459, %v1289, %v1491
        %v1524 = vsel %vm1460, %v1294, %v1492
        %v1525 = vsel %vm1461, %v1299, %v1493
        %v1526 = vmul.f32 %v1494, 1.050701
        %v1527 = vmul.f32 %v1495, 1.050701
        %v1528 = vmul.f32 %v1496, 1.050701
        %v1529 = vmul.f32 %v1497, 1.050701
        %v1530 = vmul.f32 %v1498, 1.050701
        %v1531 = vmul.f32 %v1499, 1.050701
        %v1532 = vmul.f32 %v1500, 1.050701
        %v1533 = vmul.f32 %v1501, 1.050701
        %v1534 = vmul.f32 %v1502, 1.050701
        %v1535 = vmul.f32 %v1503, 1.050701
        %v1536 = vmul.f32 %v1504, 1.050701
        %v1537 = vmul.f32 %v1505, 1.050701
        %v1538 = vmul.f32 %v1506, 1.050701
        %v1539 = vmul.f32 %v1507, 1.050701
        %v1540 = vmul.f32 %v1508, 1.050701
        %v1541 = vmul.f32 %v1509, 1.050701
        %v1542 = vmul.f32 %v1510, 1.050701
        %v1543 = vmul.f32 %v1511, 1.050701
        %v1544 = vmul.f32 %v1512, 1.050701
        %v1545 = vmul.f32 %v1513, 1.050701
        %v1546 = vmul.f32 %v1514, 1.050701
        %v1547 = vmul.f32 %v1515, 1.050701
        %v1548 = vmul.f32 %v1516, 1.050701
        %v1549 = vmul.f32 %v1517, 1.050701
        %v1550 = vmul.f32 %v1518, 1.050701
        %v1551 = vmul.f32 %v1519, 1.050701
        %v1552 = vmul.f32 %v1520, 1.050701
        %v1553 = vmul.f32 %v1521, 1.050701
        %v1554 = vmul.f32 %v1522, 1.050701
        %v1555 = vmul.f32 %v1523, 1.050701
        %v1556 = vmul.f32 %v1524, 1.050701
        %v1557 = vmul.f32 %v1525, 1.050701
        %v1558 = vld [vmem:[%s5] sm:$0xff]
        %v1559 = vld [vmem:[%s5 + $0x8] sm:$0xff]
        %v1560 = vld [vmem:[%s5 + $0x10] sm:$0xff]
        %v1561 = vld [vmem:[%s5 + $0x18] sm:$0xff]
        %v1562 = vld [vmem:[%s5 + $0x20] sm:$0xff]
        %v1563 = vld [vmem:[%s5 + $0x28] sm:$0xff]
        %v1564 = vld [vmem:[%s5 + $0x30] sm:$0xff]
        %v1565 = vld [vmem:[%s5 + $0x38] sm:$0xff]
        %v1566 = vld [vmem:[%s5 + $0x40] sm:$0xff]
        %v1567 = vld [vmem:[%s5 + $0x48] sm:$0xff]
        %v1568 = vld [vmem:[%s5 + $0x50] sm:$0xff]
        %v1569 = vld [vmem:[%s5 + $0x58] sm:$0xff]
        %v1570 = vld [vmem:[%s5 + $0x60] sm:$0xf]
        %v1571 = vld [vmem:[%s6] sm:$0x1]
        %v1573 = vlaneseq
        %v1574 = vshrl.u32 %v1573, 7
        %v1575 = vsub.s32 0, %v1574
        %v1576 = vrot.slane %v1571, %v1575
        %v1579 = vsel %vm976, %v1526, 0
        %v1582 = vsel %vm976, %v1527, 0
        %v1585 = vsel %vm976, %v1528, 0
        %v1588 = vsel %vm976, %v1529, 0
        %v1591 = vsel %vm976, %v1530, 0
        %v1594 = vsel %vm976, %v1531, 0
        %v1597 = vsel %vm976, %v1532, 0
        %v1600 = vsel %vm976, %v1533, 0
        %v1603 = vsel %vm976, %v1534, 0
        %v1606 = vsel %vm976, %v1535, 0
        %v1609 = vsel %vm976, %v1536, 0
        %v1612 = vsel %vm976, %v1537, 0
        %v1615 = vsel %vm976, %v1538, 0
        %v1618 = vsel %vm976, %v1539, 0
        %v1621 = vsel %vm976, %v1540, 0
        %v1624 = vsel %vm976, %v1541, 0
        %v1627 = vsel %vm976, %v1542, 0
        %v1630 = vsel %vm976, %v1543, 0
        %v1633 = vsel %vm976, %v1544, 0
        %v1636 = vsel %vm976, %v1545, 0
        %v1639 = vsel %vm976, %v1546, 0
        %v1642 = vsel %vm976, %v1547, 0
        %v1645 = vsel %vm976, %v1548, 0
        %v1648 = vsel %vm976, %v1549, 0
        %v1651 = vsel %vm976, %v1550, 0
        %v1654 = vsel %vm976, %v1551, 0
        %v1657 = vsel %vm976, %v1552, 0
        %v1660 = vsel %vm976, %v1553, 0
        %v1663 = vsel %vm976, %v1554, 0
        %v1666 = vsel %vm976, %v1555, 0
        %v1669 = vsel %vm976, %v1556, 0
        %v1672 = vsel %vm976, %v1557, 0
        %v1675 = vsel %vm1073, %v1570, 0
        %1677 = vmatprep.subr.mxu0 0.0
        %1678 = vmatpush1.msra.mxu0 0.0
        %1679 = vmatprep.subr.mxu0 0.0
        %1680 = vmatpush1.msra.mxu0 0.0
        %1681 = vmatprep.subr.mxu0 0.0
        %1682 = vmatpush1.msra.mxu0 0.0
        %1683 = vmatprep.subr.mxu0 0.0
        %1684 = vmatpush1.msra.mxu0 %v1675
        %1685 = vmatprep.subr.mxu0 0.0
        %1686 = vmatpush1.msra.mxu0 %v1569
        %1687 = vmatprep.subr.mxu0 0.0
        %1688 = vmatpush1.msra.mxu0 %v1568
        %1689 = vmatprep.subr.mxu0 0.0
        %1690 = vmatpush1.msra.mxu0 %v1567
        %1691 = vmatprep.subr.mxu0 0.0
        %1692 = vmatpush1.msra.mxu0 %v1566
        %1693 = vmatprep.subr.mxu0 0.0
        %1694 = vmatpush1.msra.mxu0 %v1565
        %1695 = vmatprep.subr.mxu0 0.0
        %1696 = vmatpush1.msra.mxu0 %v1564
        %1697 = vmatprep.subr.mxu0 0.0
        %1698 = vmatpush1.msra.mxu0 %v1563
        %1699 = vmatprep.subr.mxu0 0.0
        %1700 = vmatpush1.msra.mxu0 %v1562
        %1701 = vmatprep.subr.mxu0 0.0
        %1702 = vmatpush1.msra.mxu0 %v1561
        %1703 = vmatprep.subr.mxu0 0.0
        %1704 = vmatpush1.msra.mxu0 %v1560
        %1705 = vmatprep.subr.mxu0 0.0
        %1706 = vmatpush1.msra.mxu0 %v1559
        %1707 = vmatprep.subr.mxu0 0.0
        %1708 = vmatpush1.msra.mxu0 %v1558
        %1709 = vmatprep.subr.mxu0 0.0
        %1710 = vmatpush2.msra.mxu0 0.0
        %1711 = vmatprep.subr.mxu0 0.0
        %1712 = vmatpush2.msra.mxu0 0.0
        %1713 = vmatprep.subr.mxu0 0.0
        %1714 = vmatpush2.msra.mxu0 0.0
        %1715 = vmatprep.subr.mxu0 0.0
        %1716 = vmatpush2.msra.mxu0 0.0
        %1717 = vmatprep.subr.mxu0 0.0
        %1718 = vmatpush2.msra.mxu0 0.0
        %1719 = vmatprep.subr.mxu0 0.0
        %1720 = vmatpush2.msra.mxu0 0.0
        %1721 = vmatprep.subr.mxu0 0.0
        %1722 = vmatpush2.msra.mxu0 0.0
        %1723 = vmatprep.subr.mxu0 0.0
        %1724 = vmatpush2.msra.mxu0 0.0
        %1725 = vmatprep.subr.mxu0 0.0
        %1726 = vmatpush2.msra.mxu0 0.0
        %1727 = vmatprep.subr.mxu0 0.0
        %1728 = vmatpush2.msra.mxu0 0.0
        %1729 = vmatprep.subr.mxu0 0.0
        %1730 = vmatpush2.msra.mxu0 0.0
        %1731 = vmatprep.subr.mxu0 0.0
        %1732 = vmatpush2.msra.mxu0 0.0
        %1733 = vmatprep.subr.mxu0 0.0
        %1734 = vmatpush2.msra.mxu0 0.0
        %1735 = vmatprep.subr.mxu0 0.0
        %1736 = vmatpush2.msra.mxu0 0.0
        %1737 = vmatprep.subr.mxu0 0.0
        %1738 = vmatpush2.msra.mxu0 0.0
        %1739 = vmatprep.subr.mxu0 0.0
        %1740 = vmatpush2.msra.mxu0 0.0
        %1741 = vmatprep.mubr.f32.mxu0 0.0
        %1742 = vmatmul.mubr.f32.gmra.mxu0 %v1579
        %v1743 = vpop.f32.mrf.mxu0
        %v1744 = vadd.f32 %v1576, %v1743
        %v1745 = vpop.f32.mrf.mxu0
        %1746 = vmatprep.mubr.f32.mxu0 0.0
        %1747 = vmatmul.mubr.f32.gmra.mxu0 %v1582
        %v1748 = vpop.f32.mrf.mxu0
        %v1749 = vadd.f32 %v1576, %v1748
        %v1750 = vpop.f32.mrf.mxu0
        %1751 = vmatprep.mubr.f32.mxu0 0.0
        %1752 = vmatmul.mubr.f32.gmra.mxu0 %v1585
        %v1753 = vpop.f32.mrf.mxu0
        %v1754 = vadd.f32 %v1576, %v1753
        %v1755 = vpop.f32.mrf.mxu0
        %1756 = vmatprep.mubr.f32.mxu0 0.0
        %1757 = vmatmul.mubr.f32.gmra.mxu0 %v1588
        %v1758 = vpop.f32.mrf.mxu0
        %v1759 = vadd.f32 %v1576, %v1758
        %v1760 = vpop.f32.mrf.mxu0
        %1761 = vmatprep.mubr.f32.mxu0 0.0
        %1762 = vmatmul.mubr.f32.gmra.mxu0 %v1591
        %v1763 = vpop.f32.mrf.mxu0
        %v1764 = vadd.f32 %v1576, %v1763
        %v1765 = vpop.f32.mrf.mxu0
        %1766 = vmatprep.mubr.f32.mxu0 0.0
        %1767 = vmatmul.mubr.f32.gmra.mxu0 %v1594
        %v1768 = vpop.f32.mrf.mxu0
        %v1769 = vadd.f32 %v1576, %v1768
        %v1770 = vpop.f32.mrf.mxu0
        %1771 = vmatprep.mubr.f32.mxu0 0.0
        %1772 = vmatmul.mubr.f32.gmra.mxu0 %v1597
        %v1773 = vpop.f32.mrf.mxu0
        %v1774 = vadd.f32 %v1576, %v1773
        %v1775 = vpop.f32.mrf.mxu0
        %1776 = vmatprep.mubr.f32.mxu0 0.0
        %1777 = vmatmul.mubr.f32.gmra.mxu0 %v1600
        %v1778 = vpop.f32.mrf.mxu0
        %v1779 = vadd.f32 %v1576, %v1778
        %v1780 = vpop.f32.mrf.mxu0
        %1781 = vmatprep.mubr.f32.mxu0 0.0
        %1782 = vmatmul.mubr.f32.gmra.mxu0 %v1603
        %v1783 = vpop.f32.mrf.mxu0
        %v1784 = vadd.f32 %v1576, %v1783
        %v1785 = vpop.f32.mrf.mxu0
        %1786 = vmatprep.mubr.f32.mxu0 0.0
        %1787 = vmatmul.mubr.f32.gmra.mxu0 %v1606
        %v1788 = vpop.f32.mrf.mxu0
        %v1789 = vadd.f32 %v1576, %v1788
        %v1790 = vpop.f32.mrf.mxu0
        %1791 = vmatprep.mubr.f32.mxu0 0.0
        %1792 = vmatmul.mubr.f32.gmra.mxu0 %v1609
        %v1793 = vpop.f32.mrf.mxu0
        %v1794 = vadd.f32 %v1576, %v1793
        %v1795 = vpop.f32.mrf.mxu0
        %1796 = vmatprep.mubr.f32.mxu0 0.0
        %1797 = vmatmul.mubr.f32.gmra.mxu0 %v1612
        %v1798 = vpop.f32.mrf.mxu0
        %v1799 = vadd.f32 %v1576, %v1798
        %v1800 = vpop.f32.mrf.mxu0
        %1801 = vmatprep.mubr.f32.mxu0 0.0
        %1802 = vmatmul.mubr.f32.gmra.mxu0 %v1615
        %v1803 = vpop.f32.mrf.mxu0
        %v1804 = vadd.f32 %v1576, %v1803
        %v1805 = vpop.f32.mrf.mxu0
        %1806 = vmatprep.mubr.f32.mxu0 0.0
        %1807 = vmatmul.mubr.f32.gmra.mxu0 %v1618
        %v1808 = vpop.f32.mrf.mxu0
        %v1809 = vadd.f32 %v1576, %v1808
        %v1810 = vpop.f32.mrf.mxu0
        %1811 = vmatprep.mubr.f32.mxu0 0.0
        %1812 = vmatmul.mubr.f32.gmra.mxu0 %v1621
        %v1813 = vpop.f32.mrf.mxu0
        %v1814 = vadd.f32 %v1576, %v1813
        %v1815 = vpop.f32.mrf.mxu0
        %1816 = vmatprep.mubr.f32.mxu0 0.0
        %1817 = vmatmul.mubr.f32.gmra.mxu0 %v1624
        %v1818 = vpop.f32.mrf.mxu0
        %v1819 = vadd.f32 %v1576, %v1818
        %v1820 = vpop.f32.mrf.mxu0
        %1821 = vmatprep.mubr.f32.mxu0 0.0
        %1822 = vmatmul.mubr.f32.gmra.mxu0 %v1627
        %v1823 = vpop.f32.mrf.mxu0
        %v1824 = vadd.f32 %v1576, %v1823
        %v1825 = vpop.f32.mrf.mxu0
        %1826 = vmatprep.mubr.f32.mxu0 0.0
        %1827 = vmatmul.mubr.f32.gmra.mxu0 %v1630
        %v1828 = vpop.f32.mrf.mxu0
        %v1829 = vadd.f32 %v1576, %v1828
        %v1830 = vpop.f32.mrf.mxu0
        %1831 = vmatprep.mubr.f32.mxu0 0.0
        %1832 = vmatmul.mubr.f32.gmra.mxu0 %v1633
        %v1833 = vpop.f32.mrf.mxu0
        %v1834 = vadd.f32 %v1576, %v1833
        %v1835 = vpop.f32.mrf.mxu0
        %1836 = vmatprep.mubr.f32.mxu0 0.0
        %1837 = vmatmul.mubr.f32.gmra.mxu0 %v1636
        %v1838 = vpop.f32.mrf.mxu0
        %v1839 = vadd.f32 %v1576, %v1838
        %v1840 = vpop.f32.mrf.mxu0
        %1841 = vmatprep.mubr.f32.mxu0 0.0
        %1842 = vmatmul.mubr.f32.gmra.mxu0 %v1639
        %v1843 = vpop.f32.mrf.mxu0
        %v1844 = vadd.f32 %v1576, %v1843
        %v1845 = vpop.f32.mrf.mxu0
        %1846 = vmatprep.mubr.f32.mxu0 0.0
        %1847 = vmatmul.mubr.f32.gmra.mxu0 %v1642
        %v1848 = vpop.f32.mrf.mxu0
        %v1849 = vadd.f32 %v1576, %v1848
        %v1850 = vpop.f32.mrf.mxu0
        %1851 = vmatprep.mubr.f32.mxu0 0.0
        %1852 = vmatmul.mubr.f32.gmra.mxu0 %v1645
        %v1853 = vpop.f32.mrf.mxu0
        %v1854 = vadd.f32 %v1576, %v1853
        %v1855 = vpop.f32.mrf.mxu0
        %1856 = vmatprep.mubr.f32.mxu0 0.0
        %1857 = vmatmul.mubr.f32.gmra.mxu0 %v1648
        %v1858 = vpop.f32.mrf.mxu0
        %v1859 = vadd.f32 %v1576, %v1858
        %v1860 = vpop.f32.mrf.mxu0
        %1861 = vmatprep.mubr.f32.mxu0 0.0
        %1862 = vmatmul.mubr.f32.gmra.mxu0 %v1651
        %v1863 = vpop.f32.mrf.mxu0
        %v1864 = vadd.f32 %v1576, %v1863
        %v1865 = vpop.f32.mrf.mxu0
        %1866 = vmatprep.mubr.f32.mxu0 0.0
        %1867 = vmatmul.mubr.f32.gmra.mxu0 %v1654
        %v1868 = vpop.f32.mrf.mxu0
        %v1869 = vadd.f32 %v1576, %v1868
        %v1870 = vpop.f32.mrf.mxu0
        %1871 = vmatprep.mubr.f32.mxu0 0.0
        %1872 = vmatmul.mubr.f32.gmra.mxu0 %v1657
        %v1873 = vpop.f32.mrf.mxu0
        %v1874 = vadd.f32 %v1576, %v1873
        %v1875 = vpop.f32.mrf.mxu0
        %1876 = vmatprep.mubr.f32.mxu0 0.0
        %1877 = vmatmul.mubr.f32.gmra.mxu0 %v1660
        %v1878 = vpop.f32.mrf.mxu0
        %v1879 = vadd.f32 %v1576, %v1878
        %v1880 = vpop.f32.mrf.mxu0
        %1881 = vmatprep.mubr.f32.mxu0 0.0
        %1882 = vmatmul.mubr.f32.gmra.mxu0 %v1663
        %v1883 = vpop.f32.mrf.mxu0
        %v1884 = vadd.f32 %v1576, %v1883
        %v1885 = vpop.f32.mrf.mxu0
        %1886 = vmatprep.mubr.f32.mxu0 0.0
        %1887 = vmatmul.mubr.f32.gmra.mxu0 %v1666
        %v1888 = vpop.f32.mrf.mxu0
        %v1889 = vadd.f32 %v1576, %v1888
        %v1890 = vpop.f32.mrf.mxu0
        %1891 = vmatprep.mubr.f32.mxu0 0.0
        %1892 = vmatmul.mubr.f32.gmra.mxu0 %v1669
        %v1893 = vpop.f32.mrf.mxu0
        %v1894 = vadd.f32 %v1576, %v1893
        %v1895 = vpop.f32.mrf.mxu0
        %1896 = vmatprep.mubr.f32.mxu0 0.0
        %1897 = vmatmul.mubr.f32.gmra.mxu0 %v1672
        %v1898 = vpop.f32.mrf.mxu0
        %v1899 = vadd.f32 %v1576, %v1898
        %v1900 = vpop.f32.mrf.mxu0
        %1901 = vdwg.mxu0
        %v1902 = vtanh.pop %v1744
        %v1903 = vtanh.pop %v1749
        %v1904 = vtanh.pop %v1754
        %v1905 = vtanh.pop %v1759
        %v1906 = vtanh.pop %v1764
        %v1907 = vtanh.pop %v1769
        %v1908 = vtanh.pop %v1774
        %v1909 = vtanh.pop %v1779
        %v1910 = vtanh.pop %v1784
        %v1911 = vtanh.pop %v1789
        %v1912 = vtanh.pop %v1794
        %v1913 = vtanh.pop %v1799
        %v1914 = vtanh.pop %v1804
        %v1915 = vtanh.pop %v1809
        %v1916 = vtanh.pop %v1814
        %v1917 = vtanh.pop %v1819
        %v1918 = vtanh.pop %v1824
        %v1919 = vtanh.pop %v1829
        %v1920 = vtanh.pop %v1834
        %v1921 = vtanh.pop %v1839
        %v1922 = vtanh.pop %v1844
        %v1923 = vtanh.pop %v1849
        %v1924 = vtanh.pop %v1854
        %v1925 = vtanh.pop %v1859
        %v1926 = vtanh.pop %v1864
        %v1927 = vtanh.pop %v1869
        %v1928 = vtanh.pop %v1874
        %v1929 = vtanh.pop %v1879
        %v1930 = vtanh.pop %v1884
        %v1931 = vtanh.pop %v1889
        %v1932 = vtanh.pop %v1894
        %v1933 = vtanh.pop %v1899
        %v1934 = vld [vmem:[%s7] sm:$0xff]
        %v1935 = vld [vmem:[%s7 + $0x8] sm:$0xff]
        %v1936 = vld [vmem:[%s7 + $0x10] sm:$0xff]
        %v1937 = vld [vmem:[%s7 + $0x18] sm:$0xff]
        %v1938 = vld [vmem:[%s7 + $0x20] sm:$0xff]
        %v1939 = vld [vmem:[%s7 + $0x28] sm:$0xff]
        %v1940 = vld [vmem:[%s7 + $0x30] sm:$0xff]
        %v1941 = vld [vmem:[%s7 + $0x38] sm:$0xff]
        %v1942 = vld [vmem:[%s7 + $0x40] sm:$0xff]
        %v1943 = vld [vmem:[%s7 + $0x48] sm:$0xff]
        %v1944 = vld [vmem:[%s7 + $0x50] sm:$0xff]
        %v1945 = vld [vmem:[%s7 + $0x58] sm:$0xff]
        %v1946 = vld [vmem:[%s7 + $0x60] sm:$0xf]
        %v1947 = vld [vmem:[%s8] sm:$0x1]
        %v1949 = vlaneseq
        %v1950 = vshrl.u32 %v1949, 7
        %v1951 = vsub.s32 0, %v1950
        %v1952 = vrot.slane %v1947, %v1951
        %v1955 = vsel %vm976, %v1902, 0
        %v1958 = vsel %vm976, %v1903, 0
        %v1961 = vsel %vm976, %v1904, 0
        %v1964 = vsel %vm976, %v1905, 0
        %v1967 = vsel %vm976, %v1906, 0
        %v1970 = vsel %vm976, %v1907, 0
        %v1973 = vsel %vm976, %v1908, 0
        %v1976 = vsel %vm976, %v1909, 0
        %v1979 = vsel %vm976, %v1910, 0
        %v1982 = vsel %vm976, %v1911, 0
        %v1985 = vsel %vm976, %v1912, 0
        %v1988 = vsel %vm976, %v1913, 0
        %v1991 = vsel %vm976, %v1914, 0
        %v1994 = vsel %vm976, %v1915, 0
        %v1997 = vsel %vm976, %v1916, 0
        %v2000 = vsel %vm976, %v1917, 0
        %v2003 = vsel %vm976, %v1918, 0
        %v2006 = vsel %vm976, %v1919, 0
        %v2009 = vsel %vm976, %v1920, 0
        %v2012 = vsel %vm976, %v1921, 0
        %v2015 = vsel %vm976, %v1922, 0
        %v2018 = vsel %vm976, %v1923, 0
        %v2021 = vsel %vm976, %v1924, 0
        %v2024 = vsel %vm976, %v1925, 0
        %v2027 = vsel %vm976, %v1926, 0
        %v2030 = vsel %vm976, %v1927, 0
        %v2033 = vsel %vm976, %v1928, 0
        %v2036 = vsel %vm976, %v1929, 0
        %v2039 = vsel %vm976, %v1930, 0
        %v2042 = vsel %vm976, %v1931, 0
        %v2045 = vsel %vm976, %v1932, 0
        %v2048 = vsel %vm976, %v1933, 0
        %v2051 = vsel %vm1073, %v1946, 0
        %2053 = vmatprep.subr.mxu0 0.0
        %2054 = vmatpush1.msra.mxu0 0.0
        %2055 = vmatprep.subr.mxu0 0.0
        %2056 = vmatpush1.msra.mxu0 0.0
        %2057 = vmatprep.subr.mxu0 0.0
        %2058 = vmatpush1.msra.mxu0 0.0
        %2059 = vmatprep.subr.mxu0 0.0
        %2060 = vmatpush1.msra.mxu0 %v2051
        %2061 = vmatprep.subr.mxu0 0.0
        %2062 = vmatpush1.msra.mxu0 %v1945
        %2063 = vmatprep.subr.mxu0 0.0
        %2064 = vmatpush1.msra.mxu0 %v1944
        %2065 = vmatprep.subr.mxu0 0.0
        %2066 = vmatpush1.msra.mxu0 %v1943
        %2067 = vmatprep.subr.mxu0 0.0
        %2068 = vmatpush1.msra.mxu0 %v1942
        %2069 = vmatprep.subr.mxu0 0.0
        %2070 = vmatpush1.msra.mxu0 %v1941
        %2071 = vmatprep.subr.mxu0 0.0
        %2072 = vmatpush1.msra.mxu0 %v1940
        %2073 = vmatprep.subr.mxu0 0.0
        %2074 = vmatpush1.msra.mxu0 %v1939
        %2075 = vmatprep.subr.mxu0 0.0
        %2076 = vmatpush1.msra.mxu0 %v1938
        %2077 = vmatprep.subr.mxu0 0.0
        %2078 = vmatpush1.msra.mxu0 %v1937
        %2079 = vmatprep.subr.mxu0 0.0
        %2080 = vmatpush1.msra.mxu0 %v1936
        %2081 = vmatprep.subr.mxu0 0.0
        %2082 = vmatpush1.msra.mxu0 %v1935
        %2083 = vmatprep.subr.mxu0 0.0
        %2084 = vmatpush1.msra.mxu0 %v1934
        %2085 = vmatprep.subr.mxu0 0.0
        %2086 = vmatpush2.msra.mxu0 0.0
        %2087 = vmatprep.subr.mxu0 0.0
        %2088 = vmatpush2.msra.mxu0 0.0
        %2089 = vmatprep.subr.mxu0 0.0
        %2090 = vmatpush2.msra.mxu0 0.0
        %2091 = vmatprep.subr.mxu0 0.0
        %2092 = vmatpush2.msra.mxu0 0.0
        %2093 = vmatprep.subr.mxu0 0.0
        %2094 = vmatpush2.msra.mxu0 0.0
        %2095 = vmatprep.subr.mxu0 0.0
        %2096 = vmatpush2.msra.mxu0 0.0
        %2097 = vmatprep.subr.mxu0 0.0
        %2098 = vmatpush2.msra.mxu0 0.0
        %2099 = vmatprep.subr.mxu0 0.0
        %2100 = vmatpush2.msra.mxu0 0.0
        %2101 = vmatprep.subr.mxu0 0.0
        %2102 = vmatpush2.msra.mxu0 0.0
        %2103 = vmatprep.subr.mxu0 0.0
        %2104 = vmatpush2.msra.mxu0 0.0
        %2105 = vmatprep.subr.mxu0 0.0
        %2106 = vmatpush2.msra.mxu0 0.0
        %2107 = vmatprep.subr.mxu0 0.0
        %2108 = vmatpush2.msra.mxu0 0.0
        %2109 = vmatprep.subr.mxu0 0.0
        %2110 = vmatpush2.msra.mxu0 0.0
        %2111 = vmatprep.subr.mxu0 0.0
        %2112 = vmatpush2.msra.mxu0 0.0
        %2113 = vmatprep.subr.mxu0 0.0
        %2114 = vmatpush2.msra.mxu0 0.0
        %2115 = vmatprep.subr.mxu0 0.0
        %2116 = vmatpush2.msra.mxu0 0.0
        %2117 = vmatprep.mubr.f32.mxu0 0.0
        %2118 = vmatmul.mubr.f32.gmra.mxu0 %v1955
        %v2119 = vpop.f32.mrf.mxu0
        %v2120 = vadd.f32 %v1952, %v2119
        %v2121 = vpop.f32.mrf.mxu0
        %2122 = vmatprep.mubr.f32.mxu0 0.0
        %2123 = vmatmul.mubr.f32.gmra.mxu0 %v1958
        %v2124 = vpop.f32.mrf.mxu0
        %v2125 = vadd.f32 %v1952, %v2124
        %v2126 = vpop.f32.mrf.mxu0
        %2127 = vmatprep.mubr.f32.mxu0 0.0
        %2128 = vmatmul.mubr.f32.gmra.mxu0 %v1961
        %v2129 = vpop.f32.mrf.mxu0
        %v2130 = vadd.f32 %v1952, %v2129
        %v2131 = vpop.f32.mrf.mxu0
        %2132 = vmatprep.mubr.f32.mxu0 0.0
        %2133 = vmatmul.mubr.f32.gmra.mxu0 %v1964
        %v2134 = vpop.f32.mrf.mxu0
        %v2135 = vadd.f32 %v1952, %v2134
        %v2136 = vpop.f32.mrf.mxu0
        %2137 = vmatprep.mubr.f32.mxu0 0.0
        %2138 = vmatmul.mubr.f32.gmra.mxu0 %v1967
        %v2139 = vpop.f32.mrf.mxu0
        %v2140 = vadd.f32 %v1952, %v2139
        %v2141 = vpop.f32.mrf.mxu0
        %2142 = vmatprep.mubr.f32.mxu0 0.0
        %2143 = vmatmul.mubr.f32.gmra.mxu0 %v1970
        %v2144 = vpop.f32.mrf.mxu0
        %v2145 = vadd.f32 %v1952, %v2144
        %v2146 = vpop.f32.mrf.mxu0
        %2147 = vmatprep.mubr.f32.mxu0 0.0
        %2148 = vmatmul.mubr.f32.gmra.mxu0 %v1973
        %v2149 = vpop.f32.mrf.mxu0
        %v2150 = vadd.f32 %v1952, %v2149
        %v2151 = vpop.f32.mrf.mxu0
        %2152 = vmatprep.mubr.f32.mxu0 0.0
        %2153 = vmatmul.mubr.f32.gmra.mxu0 %v1976
        %v2154 = vpop.f32.mrf.mxu0
        %v2155 = vadd.f32 %v1952, %v2154
        %v2156 = vpop.f32.mrf.mxu0
        %2157 = vmatprep.mubr.f32.mxu0 0.0
        %2158 = vmatmul.mubr.f32.gmra.mxu0 %v1979
        %v2159 = vpop.f32.mrf.mxu0
        %v2160 = vadd.f32 %v1952, %v2159
        %v2161 = vpop.f32.mrf.mxu0
        %2162 = vmatprep.mubr.f32.mxu0 0.0
        %2163 = vmatmul.mubr.f32.gmra.mxu0 %v1982
        %v2164 = vpop.f32.mrf.mxu0
        %v2165 = vadd.f32 %v1952, %v2164
        %v2166 = vpop.f32.mrf.mxu0
        %2167 = vmatprep.mubr.f32.mxu0 0.0
        %2168 = vmatmul.mubr.f32.gmra.mxu0 %v1985
        %v2169 = vpop.f32.mrf.mxu0
        %v2170 = vadd.f32 %v1952, %v2169
        %v2171 = vpop.f32.mrf.mxu0
        %2172 = vmatprep.mubr.f32.mxu0 0.0
        %2173 = vmatmul.mubr.f32.gmra.mxu0 %v1988
        %v2174 = vpop.f32.mrf.mxu0
        %v2175 = vadd.f32 %v1952, %v2174
        %v2176 = vpop.f32.mrf.mxu0
        %2177 = vmatprep.mubr.f32.mxu0 0.0
        %2178 = vmatmul.mubr.f32.gmra.mxu0 %v1991
        %v2179 = vpop.f32.mrf.mxu0
        %v2180 = vadd.f32 %v1952, %v2179
        %v2181 = vpop.f32.mrf.mxu0
        %2182 = vmatprep.mubr.f32.mxu0 0.0
        %2183 = vmatmul.mubr.f32.gmra.mxu0 %v1994
        %v2184 = vpop.f32.mrf.mxu0
        %v2185 = vadd.f32 %v1952, %v2184
        %v2186 = vpop.f32.mrf.mxu0
        %2187 = vmatprep.mubr.f32.mxu0 0.0
        %2188 = vmatmul.mubr.f32.gmra.mxu0 %v1997
        %v2189 = vpop.f32.mrf.mxu0
        %v2190 = vadd.f32 %v1952, %v2189
        %v2191 = vpop.f32.mrf.mxu0
        %2192 = vmatprep.mubr.f32.mxu0 0.0
        %2193 = vmatmul.mubr.f32.gmra.mxu0 %v2000
        %v2194 = vpop.f32.mrf.mxu0
        %v2195 = vadd.f32 %v1952, %v2194
        %v2196 = vpop.f32.mrf.mxu0
        %2197 = vmatprep.mubr.f32.mxu0 0.0
        %2198 = vmatmul.mubr.f32.gmra.mxu0 %v2003
        %v2199 = vpop.f32.mrf.mxu0
        %v2200 = vadd.f32 %v1952, %v2199
        %v2201 = vpop.f32.mrf.mxu0
        %2202 = vmatprep.mubr.f32.mxu0 0.0
        %2203 = vmatmul.mubr.f32.gmra.mxu0 %v2006
        %v2204 = vpop.f32.mrf.mxu0
        %v2205 = vadd.f32 %v1952, %v2204
        %v2206 = vpop.f32.mrf.mxu0
        %2207 = vmatprep.mubr.f32.mxu0 0.0
        %2208 = vmatmul.mubr.f32.gmra.mxu0 %v2009
        %v2209 = vpop.f32.mrf.mxu0
        %v2210 = vadd.f32 %v1952, %v2209
        %v2211 = vpop.f32.mrf.mxu0
        %2212 = vmatprep.mubr.f32.mxu0 0.0
        %2213 = vmatmul.mubr.f32.gmra.mxu0 %v2012
        %v2214 = vpop.f32.mrf.mxu0
        %v2215 = vadd.f32 %v1952, %v2214
        %v2216 = vpop.f32.mrf.mxu0
        %2217 = vmatprep.mubr.f32.mxu0 0.0
        %2218 = vmatmul.mubr.f32.gmra.mxu0 %v2015
        %v2219 = vpop.f32.mrf.mxu0
        %v2220 = vadd.f32 %v1952, %v2219
        %v2221 = vpop.f32.mrf.mxu0
        %2222 = vmatprep.mubr.f32.mxu0 0.0
        %2223 = vmatmul.mubr.f32.gmra.mxu0 %v2018
        %v2224 = vpop.f32.mrf.mxu0
        %v2225 = vadd.f32 %v1952, %v2224
        %v2226 = vpop.f32.mrf.mxu0
        %2227 = vmatprep.mubr.f32.mxu0 0.0
        %2228 = vmatmul.mubr.f32.gmra.mxu0 %v2021
        %v2229 = vpop.f32.mrf.mxu0
        %v2230 = vadd.f32 %v1952, %v2229
        %v2231 = vpop.f32.mrf.mxu0
        %2232 = vmatprep.mubr.f32.mxu0 0.0
        %2233 = vmatmul.mubr.f32.gmra.mxu0 %v2024
        %v2234 = vpop.f32.mrf.mxu0
        %v2235 = vadd.f32 %v1952, %v2234
        %v2236 = vpop.f32.mrf.mxu0
        %2237 = vmatprep.mubr.f32.mxu0 0.0
        %2238 = vmatmul.mubr.f32.gmra.mxu0 %v2027
        %v2239 = vpop.f32.mrf.mxu0
        %v2240 = vadd.f32 %v1952, %v2239
        %v2241 = vpop.f32.mrf.mxu0
        %2242 = vmatprep.mubr.f32.mxu0 0.0
        %2243 = vmatmul.mubr.f32.gmra.mxu0 %v2030
        %v2244 = vpop.f32.mrf.mxu0
        %v2245 = vadd.f32 %v1952, %v2244
        %v2246 = vpop.f32.mrf.mxu0
        %2247 = vmatprep.mubr.f32.mxu0 0.0
        %2248 = vmatmul.mubr.f32.gmra.mxu0 %v2033
        %v2249 = vpop.f32.mrf.mxu0
        %v2250 = vadd.f32 %v1952, %v2249
        %v2251 = vpop.f32.mrf.mxu0
        %2252 = vmatprep.mubr.f32.mxu0 0.0
        %2253 = vmatmul.mubr.f32.gmra.mxu0 %v2036
        %v2254 = vpop.f32.mrf.mxu0
        %v2255 = vadd.f32 %v1952, %v2254
        %v2256 = vpop.f32.mrf.mxu0
        %2257 = vmatprep.mubr.f32.mxu0 0.0
        %2258 = vmatmul.mubr.f32.gmra.mxu0 %v2039
        %v2259 = vpop.f32.mrf.mxu0
        %v2260 = vadd.f32 %v1952, %v2259
        %v2261 = vpop.f32.mrf.mxu0
        %2262 = vmatprep.mubr.f32.mxu0 0.0
        %2263 = vmatmul.mubr.f32.gmra.mxu0 %v2042
        %v2264 = vpop.f32.mrf.mxu0
        %v2265 = vadd.f32 %v1952, %v2264
        %v2266 = vpop.f32.mrf.mxu0
        %2267 = vmatprep.mubr.f32.mxu0 0.0
        %2268 = vmatmul.mubr.f32.gmra.mxu0 %v2045
        %v2269 = vpop.f32.mrf.mxu0
        %v2270 = vadd.f32 %v1952, %v2269
        %v2271 = vpop.f32.mrf.mxu0
        %2272 = vmatprep.mubr.f32.mxu0 0.0
        %2273 = vmatmul.mubr.f32.gmra.mxu0 %v2048
        %v2274 = vpop.f32.mrf.mxu0
        %v2275 = vadd.f32 %v1952, %v2274
        %v2276 = vpop.f32.mrf.mxu0
        %2277 = vdwg.mxu0
        %2278 = vxpose.xlu0.b32.start [1/16] %v2120, 128
        %2279 = vxpose.xlu0.b32.cont [2/16] %v2125, 128
        %2280 = vxpose.xlu0.b32.cont [3/16] %v2130, 128
        %2281 = vxpose.xlu0.b32.cont [4/16] %v2135, 128
        %2282 = vxpose.xlu0.b32.cont [5/16] %v2140, 128
        %2283 = vxpose.xlu0.b32.cont [6/16] %v2145, 128
        %2284 = vxpose.xlu0.b32.cont [7/16] %v2150, 128
        %2285 = vxpose.xlu0.b32.cont [8/16] %v2155, 128
        %2286 = vxpose.xlu0.b32.cont [9/16] %v2160, 128
        %2287 = vxpose.xlu0.b32.cont [10/16] %v2165, 128
        %2288 = vxpose.xlu0.b32.cont [11/16] %v2170, 128
        %2289 = vxpose.xlu0.b32.cont [12/16] %v2175, 128
        %2290 = vxpose.xlu0.b32.cont [13/16] %v2180, 128
        %2291 = vxpose.xlu0.b32.cont [14/16] %v2185, 128
        %2292 = vxpose.xlu0.b32.cont [15/16] %v2190, 128
        %2293 = vxpose.xlu0.b32.end [16/16] %v2195, 128
        %v2294 = vpop.trf.xlu0
        %v2295 = vpop.trf.xlu0
        %v2296 = vpop.trf.xlu0
        %v2297 = vpop.trf.xlu0
        %v2298 = vpop.trf.xlu0
        %v2299 = vpop.trf.xlu0
        %v2300 = vpop.trf.xlu0
        %v2301 = vpop.trf.xlu0
        %v2302 = vpop.trf.xlu0
        %v2303 = vpop.trf.xlu0
        %v2304 = vpop.trf.xlu0
        %v2305 = vpop.trf.xlu0
        %v2306 = vpop.trf.xlu0
        %v2307 = vpop.trf.xlu0
        %v2308 = vpop.trf.xlu0
        %v2309 = vpop.trf.xlu0
        %2310 = vxpose.xlu0.b32.start [1/16] %v2200, 128
        %2311 = vxpose.xlu0.b32.cont [2/16] %v2205, 128
        %2312 = vxpose.xlu0.b32.cont [3/16] %v2210, 128
        %2313 = vxpose.xlu0.b32.cont [4/16] %v2215, 128
        %2314 = vxpose.xlu0.b32.cont [5/16] %v2220, 128
        %2315 = vxpose.xlu0.b32.cont [6/16] %v2225, 128
        %2316 = vxpose.xlu0.b32.cont [7/16] %v2230, 128
        %2317 = vxpose.xlu0.b32.cont [8/16] %v2235, 128
        %2318 = vxpose.xlu0.b32.cont [9/16] %v2240, 128
        %2319 = vxpose.xlu0.b32.cont [10/16] %v2245, 128
        %2320 = vxpose.xlu0.b32.cont [11/16] %v2250, 128
        %2321 = vxpose.xlu0.b32.cont [12/16] %v2255, 128
        %2322 = vxpose.xlu0.b32.cont [13/16] %v2260, 128
        %2323 = vxpose.xlu0.b32.cont [14/16] %v2265, 128
        %2324 = vxpose.xlu0.b32.cont [15/16] %v2270, 128
        %2325 = vxpose.xlu0.b32.end [16/16] %v2275, 128
        %v2326 = vpop.trf.xlu0
        %v2327 = vpop.trf.xlu0
        %v2328 = vpop.trf.xlu0
        %v2329 = vpop.trf.xlu0
        %v2330 = vpop.trf.xlu0
        %v2331 = vpop.trf.xlu0
        %v2332 = vpop.trf.xlu0
        %v2333 = vpop.trf.xlu0
        %v2334 = vpop.trf.xlu0
        %v2335 = vpop.trf.xlu0
        %v2336 = vpop.trf.xlu0
        %v2337 = vpop.trf.xlu0
        %v2338 = vpop.trf.xlu0
        %v2339 = vpop.trf.xlu0
        %v2340 = vpop.trf.xlu0
        %v2341 = vpop.trf.xlu0
        %v2344 = vcombine.low %v2294, %v2326
        %v2346 = vunpack.c.l.s4 1983009808
        %v2347 = vunpack.c.0.s8 %v2346
        %v2348 = vlaneseq
        %v2349 = vshrl.u32 %v2348, 7
        %v2350 = vsub.s32 %v2347, %v2349
        %v2351 = vrot.slane %v2344, %v2350
        %2353 = vst [vmem:[%s326] sm:$0xf] %v2351
        %s2354 = sand.u32 %s225, 1
        %s2355 = scalar_lea.sflag [#allocation3], %s2354
        %s2356 = sand.u32 %s225, 1
        %s2357 = smul.addr %s2356, 4
        %s2358 = scalar_lea.vmem [#allocation2], %s2357
        // Predicated region
        $region57: #{tpu_custom_call.1} parent=55 // pred_check
          %p2359 = pneg %p235
        $region58: #{tpu_custom_call.1} parent=55 // pred_check_branch
          %2361 = sbr.rel (%p2359) target = $region60
        $region59: #{tpu_custom_call.1} parent=55 // pred_region
          %s2362 = smul.u32 2, %s23
          %s2364 = ssub.s32 64, 64
          %2365 = vsyncadd %s2355, %s2364
          %s2366 = smul.addr %s2362, 32
          %s2367 = scalar_lea.hbm %s9, %s2366
          %s2369 = sshll.u32 %s2358, 4
          %s2370 = int_to_ptr.vmem [resolvable:$true] %s2369
          %2372 = dma.vmem_to_hbm [thread:$0]  %s2370, 64, %s2367, %s2355
        $region60: #{tpu_custom_call.1} parent=55 // pred_fallthru
          _
      $region56: #{tpu_custom_call.1} parent=5 // pred_fallthru
        _
      %p2373 = scmp.le.s32.totalorder 2, %s18
      // Predicated region
      $region61: #{tpu_custom_call.1} parent=5 // pred_check
        %p2374 = pneg %p2373
      $region62: #{tpu_custom_call.1} parent=5 // pred_check_branch
        %2376 = sbr.rel (%p2374) target = $region64
      $region63: #{tpu_custom_call.1} parent=5 // pred_region
        %s2377 = ssub.s32 %s18, 2
        // Predicated region
        $region65: #{tpu_custom_call.1} parent=63 // pred_check
          %p2378 = pneg %p241
        $region66: #{tpu_custom_call.1} parent=63 // pred_check_branch
          %2380 = sbr.rel (%p2378) target = $region68
        $region67: #{tpu_custom_call.1} parent=63 // pred_region
          %s2381 = sand.u32 %s226, 1
          %s2382 = scalar_lea.sflag [#allocation3], %s2381
          %s2383 = sand.u32 %s226, 1
          %s2384 = smul.addr %s2383, 4
          %s2385 = scalar_lea.vmem [#allocation2], %s2384
          %2386 = dma.done %s2382, 64
        $region68: #{tpu_custom_call.1} parent=63 // pred_fallthru
          _
      $region64: #{tpu_custom_call.1} parent=5 // pred_fallthru
        _
    $region6: #{tpu_custom_call.1} parent=1 // loop_footer
      %s22 = sadd.s32 1, %s18
    $region7: #{tpu_custom_call.1} parent=1 // loop_footer_branch
      %17 = sbr.rel target = $region3
    $region8: #{tpu_custom_call.1} parent=1 // loop_exit
      _
    %2387 = vsyncpa [#allocation3], 1
    %s2388 = scalar_lea.sflag [#allocation3], 1
    %2389 = vsyncpa %s2388, 1

</llo_original>
